<compile_context>
chip_gen: v5e
topology: v5e:2x2
jax: 0.10.0
libtpu: 0.0.40
codegen_flags: <defaults>
</compile_context>

<pallas_src>
import jax
import jax.numpy as jnp
from jax.experimental import pallas as pl
from jax.experimental.pallas import tpu as pltpu

FEAT = 512


def mlp_kernel(x_ref, w_ref, b_ref, o_ref):
    """Fully fused MLP: all layers in one grid step.

    x_ref: (TM, 512) bf16 activation tile.
    w_ref: (L, 512, 512) bf16 weight stack, VMEM-resident.
    b_ref: (L, 1, 512) f32 bias stack, VMEM-resident.
    o_ref: (TM, 512) f32 output tile.
    """
    num_layers = w_ref.shape[0]  # static (= 3 after the Linear-Linear fold)

    h = x_ref[...]  # bf16
    # All layers except the last (the folded Linear-Linear) have a ReLU.
    for l in range(num_layers - 1):
        acc = jnp.dot(h, w_ref[l], preferred_element_type=jnp.float32)
        acc = acc + b_ref[l]
        h = jnp.maximum(acc, 0.0).astype(jnp.bfloat16)

    acc = jnp.dot(h, w_ref[num_layers - 1],
                  preferred_element_type=jnp.float32)
    acc = acc + b_ref[num_layers - 1]
    o_ref[...] = acc.astype(o_ref.dtype)


def prepare_params(params):
    """Fold layers 3&4 and pack weights (bf16) / biases (f32) for the kernel.

    params: list of 4 tuples (W (512,512) f32, b (1,512) f32) in x @ W + b
    convention (i.e. W is the transpose of PyTorch's weight matrix).
    """
    (w1, b1), (w2, b2), (w3, b3), (w4, b4) = params
    # Exact algebraic fusion of the two trailing Linear layers (no ReLU between).
    w34 = jnp.dot(w3, w4, preferred_element_type=jnp.float32)
    b34 = jnp.dot(b3.reshape(1, FEAT), w4,
                  preferred_element_type=jnp.float32) + b4.reshape(1, FEAT)

    w_stack = jnp.stack([w1, w2, w34]).astype(jnp.bfloat16)   # (3, 512, 512)
    b_stack = jnp.stack([b1.reshape(1, FEAT),
                         b2.reshape(1, FEAT),
                         b34]).astype(jnp.float32)            # (3, 1, 512)
    return w_stack, b_stack


def _pick_tm(B):
    """Largest aligned batch tile <= 2048 rows that divides B; prefer >= 2
    tiles (when possible) so v7x's two TensorCores both get work on the
    'parallel' batch axis."""
    divisors = [t for t in range(8, min(B, 2048) + 1, 8) if B % t == 0]
    if not divisors:
        return B  # full-extent block (exempt from the (8,128) constraint)
    tm = divisors[-1]
    if B >= 16 and B // tm < 2:
        halves = [t for t in divisors if t <= tm // 2]
        if halves:
            tm = halves[-1]
    return tm


def mlp_forward(x, w_stack, b_stack, *, tm=None):
    """x: (B, 512) f32.  w_stack: (L, 512, 512) bf16.  b_stack: (L, 1, 512) f32."""
    B, F = x.shape
    L = w_stack.shape[0]

    if tm is None:
        tm = _pick_tm(B)
    assert B % tm == 0, "batch must be divisible by the batch tile"
    assert tm == B or tm % 8 == 0, "batch tile must be sublane aligned"

    # bf16 activations into the kernel: halves input HBM traffic; numerics
    # unchanged vs. an in-kernel cast since the MXU consumes bf16 anyway.
    x_bf16 = x.astype(jnp.bfloat16)

    cost = pl.CostEstimate(
        flops=int(2 * B * F * F * L),
        transcendentals=0,
        bytes_accessed=int(w_stack.size * w_stack.dtype.itemsize   # weights: once
                           + b_stack.size * 4                      # biases: once
                           + x_bf16.size * 2                       # input (bf16)
                           + B * F * 4),                           # output (f32)
    )

    return pl.pallas_call(
        mlp_kernel,
        out_shape=jax.ShapeDtypeStruct((B, F), jnp.float32),
        grid=(B // tm,),
        in_specs=[
            pl.BlockSpec((tm, F), lambda i: (i, 0)),       # activation tile
            pl.BlockSpec((L, F, F), lambda i: (0, 0, 0)),  # resident weight stack
            pl.BlockSpec((L, 1, F), lambda i: (0, 0, 0)),  # resident bias stack
        ],
        out_specs=pl.BlockSpec((tm, F), lambda i: (i, 0)),
        compiler_params=pltpu.CompilerParams(
            dimension_semantics=("parallel",),   # megacore split on v7x
            vmem_limit_bytes=32 << 20,           # ~16 MiB working set at tm=2048
        ),
        cost_estimate=cost,
    )(x_bf16, w_stack, b_stack)


def init_params(key):
    """Deterministic init mimicking PyTorch nn.Linear default U(-k, k), k=1/sqrt(in)."""
    params = []
    k = 1.0 / jnp.sqrt(jnp.float32(FEAT))
    for _ in range(4):
        key, kw, kb = jax.random.split(key, 3)
        w = jax.random.uniform(kw, (FEAT, FEAT), jnp.float32, -k, k)
        b = jax.random.uniform(kb, (1, FEAT), jnp.float32, -k, k)
        params.append((w, b))
    return params


def reference_forward(x, params):
    """Full-precision 4-layer reference matching the PyTorch module semantics."""
    h = x
    for i, (w, b) in enumerate(params):
        h = h @ w + b
        if i < 2:
            h = jnp.maximum(h, 0.0)
    return h


if __name__ == "__main__":
    key = jax.random.PRNGKey(0)
    key, kx = jax.random.split(key)

    B = 8  # small batch, multiple of 8 for sublane alignment
    x = jax.random.normal(kx, (B, FEAT), jnp.float32)
    params = init_params(key)
    w_stack, b_stack = prepare_params(params)

    out = mlp_forward(x, w_stack, b_stack)
    out = jax.block_until_ready(out)

    ref = reference_forward(x, params)
    assert out.shape == (B, FEAT)
    max_err = float(jnp.max(jnp.abs(out - ref)))
    # bf16 weights/activations with f32 accumulation: tolerance set accordingly.
    assert jnp.allclose(out, ref, atol=2e-2, rtol=2e-2), (
        f"mismatch vs reference, max_abs_err={max_err}")

    print("KERNEL_OK")
</pallas_src>

<mosaic_0001>
module attributes {stable_mosaic.version = 11 : i64} {
  func.func @mlp_kernel(%arg0: i32, %arg1: memref<8x512xbf16, #tpu.memory_space<vmem>>, %arg2: memref<3x512x512xbf16, #tpu.memory_space<vmem>>, %arg3: memref<3x1x512xf32, #tpu.memory_space<vmem>>, %arg4: memref<8x512xf32, #tpu.memory_space<vmem>>) attributes {dimension_semantics = [#tpu.dimension_semantics<parallel>], iteration_bounds = array<i64: 1>, scalar_prefetch = 0 : i64, scratch_operands = 0 : i64, tpu.core_type = #tpu.core_type<tc>, window_params = [{transform_indices = @transform_0, window_bounds = array<i64: 8, 512>}, {pipeline_mode = #tpu.pipeline_mode<synchronous>, transform_indices = @transform_1, window_bounds = array<i64: 3, 512, 512>}, {pipeline_mode = #tpu.pipeline_mode<synchronous>, transform_indices = @transform_2, window_bounds = array<i64: 3, 1, 512>}, {transform_indices = @transform_3, window_bounds = array<i64: 8, 512>}]} {
    %c0 = arith.constant 0 : index
    %c0_0 = arith.constant 0 : index
    %0 = vector.load %arg1[%c0, %c0_0] : memref<8x512xbf16, #tpu.memory_space<vmem>>, vector<8x512xbf16>
    %c0_1 = arith.constant 0 : index
    %c0_2 = arith.constant 0 : index
    %c0_3 = arith.constant 0 : index
    %1 = vector.load %arg2[%c0_1, %c0_2, %c0_3] : memref<3x512x512xbf16, #tpu.memory_space<vmem>>, vector<1x512x512xbf16>
    %2 = vector.shape_cast %1 : vector<1x512x512xbf16> to vector<512x512xbf16>
    %cst = arith.constant dense<0.000000e+00> : vector<8x512xf32>
    %3 = tpu.matmul %0, %2, %cst {dimension_numbers = #tpu.dot_dimension_numbers<[1], [0], [0], [1], [0, 0, 1, 1], [], []>} : vector<8x512xbf16>, vector<512x512xbf16>, vector<8x512xf32> -> vector<8x512xf32>
    %c0_4 = arith.constant 0 : index
    %c0_5 = arith.constant 0 : index
    %c0_6 = arith.constant 0 : index
    %4 = vector.load %arg3[%c0_4, %c0_5, %c0_6] : memref<3x1x512xf32, #tpu.memory_space<vmem>>, vector<1x1x512xf32>
    %5 = vector.shape_cast %4 : vector<1x1x512xf32> to vector<1x512xf32>
    %6 = vector.broadcast %5 : vector<1x512xf32> to vector<8x512xf32>
    %7 = arith.addf %3, %6 : vector<8x512xf32>
    %cst_7 = arith.constant 0.000000e+00 : f32
    %8 = vector.broadcast %cst_7 : f32 to vector<8x512xf32>
    %9 = arith.maximumf %7, %8 : vector<8x512xf32>
    %10 = arith.truncf %9 : vector<8x512xf32> to vector<8x512xbf16>
    %c1 = arith.constant 1 : index
    %c0_8 = arith.constant 0 : index
    %c0_9 = arith.constant 0 : index
    %11 = vector.load %arg2[%c1, %c0_8, %c0_9] : memref<3x512x512xbf16, #tpu.memory_space<vmem>>, vector<1x512x512xbf16>
    %12 = vector.shape_cast %11 : vector<1x512x512xbf16> to vector<512x512xbf16>
    %cst_10 = arith.constant dense<0.000000e+00> : vector<8x512xf32>
    %13 = tpu.matmul %10, %12, %cst_10 {dimension_numbers = #tpu.dot_dimension_numbers<[1], [0], [0], [1], [0, 0, 1, 1], [], []>} : vector<8x512xbf16>, vector<512x512xbf16>, vector<8x512xf32> -> vector<8x512xf32>
    %c1_11 = arith.constant 1 : index
    %c0_12 = arith.constant 0 : index
    %c0_13 = arith.constant 0 : index
    %14 = vector.load %arg3[%c1_11, %c0_12, %c0_13] : memref<3x1x512xf32, #tpu.memory_space<vmem>>, vector<1x1x512xf32>
    %15 = vector.shape_cast %14 : vector<1x1x512xf32> to vector<1x512xf32>
    %16 = vector.broadcast %15 : vector<1x512xf32> to vector<8x512xf32>
    %17 = arith.addf %13, %16 : vector<8x512xf32>
    %cst_14 = arith.constant 0.000000e+00 : f32
    %18 = vector.broadcast %cst_14 : f32 to vector<8x512xf32>
    %19 = arith.maximumf %17, %18 : vector<8x512xf32>
    %20 = arith.truncf %19 : vector<8x512xf32> to vector<8x512xbf16>
    %c2 = arith.constant 2 : index
    %c0_15 = arith.constant 0 : index
    %c0_16 = arith.constant 0 : index
    %21 = vector.load %arg2[%c2, %c0_15, %c0_16] : memref<3x512x512xbf16, #tpu.memory_space<vmem>>, vector<1x512x512xbf16>
    %22 = vector.shape_cast %21 : vector<1x512x512xbf16> to vector<512x512xbf16>
    %cst_17 = arith.constant dense<0.000000e+00> : vector<8x512xf32>
    %23 = tpu.matmul %20, %22, %cst_17 {dimension_numbers = #tpu.dot_dimension_numbers<[1], [0], [0], [1], [0, 0, 1, 1], [], []>} : vector<8x512xbf16>, vector<512x512xbf16>, vector<8x512xf32> -> vector<8x512xf32>
    %c2_18 = arith.constant 2 : index
    %c0_19 = arith.constant 0 : index
    %c0_20 = arith.constant 0 : index
    %24 = vector.load %arg3[%c2_18, %c0_19, %c0_20] : memref<3x1x512xf32, #tpu.memory_space<vmem>>, vector<1x1x512xf32>
    %25 = vector.shape_cast %24 : vector<1x1x512xf32> to vector<1x512xf32>
    %26 = vector.broadcast %25 : vector<1x512xf32> to vector<8x512xf32>
    %27 = arith.addf %23, %26 : vector<8x512xf32>
    %c0_21 = arith.constant 0 : index
    %c0_22 = arith.constant 0 : index
    %28 = vector.load %arg4[%c0_21, %c0_22] : memref<8x512xf32, #tpu.memory_space<vmem>>, vector<8x512xf32>
    tpu.vector_store %arg4[%c0_21, %c0_22], %27 {strides = array<i32>} : memref<8x512xf32, #tpu.memory_space<vmem>>, vector<8x512xf32>,
    return
  }
  func.func @transform_0(%arg0: i32) -> (i32, i32) {
    %c0_i32 = arith.constant 0 : i32
    %c0_i32_0 = arith.constant 0 : i32
    return %arg0, %c0_i32 : i32, i32
  }
  func.func @transform_1(%arg0: i32) -> (i32, i32, i32) {
    %c0_i32 = arith.constant 0 : i32
    %c0_i32_0 = arith.constant 0 : i32
    %c0_i32_1 = arith.constant 0 : i32
    %c0_i32_2 = arith.constant 0 : i32
    return %c0_i32, %c0_i32_0, %c0_i32_1 : i32, i32, i32
  }
  func.func @transform_2(%arg0: i32) -> (i32, i32, i32) {
    %c0_i32 = arith.constant 0 : i32
    %c0_i32_0 = arith.constant 0 : i32
    %c0_i32_1 = arith.constant 0 : i32
    %c0_i32_2 = arith.constant 0 : i32
    return %c0_i32, %c0_i32_0, %c0_i32_1 : i32, i32, i32
  }
  func.func @transform_3(%arg0: i32) -> (i32, i32) {
    %c0_i32 = arith.constant 0 : i32
    %c0_i32_0 = arith.constant 0 : i32
    return %arg0, %c0_i32 : i32, i32
  }
}

</mosaic_0001>

<llo_original>
// kernel: tpu_custom_call.1
$region0: #{tpu_custom_call.1}
  #allocation0 [shape = 'u32[]', space=smem, size = 0x4, offset = 0x4, fixed_abs, tag = 'smem constant byte address 0x4 - core index']
  #allocation1 [shape = 'u32[72,128]{1,0:T(1,128)}', space=vmem, size = 0x9000, scoped, tag = 'internal scratch']
  %s0 = inlined_call_operand.hbm [shape: bf16[8,512], index: 0, kind: input, shape index: {}]
  %s1 = inlined_call_operand.hbm [shape: bf16[3,512,512], index: 1, kind: input, shape index: {}]
  %s2 = inlined_call_operand.hbm [shape: f32[3,1,512], index: 2, kind: input, shape index: {}]
  %s3 = inlined_call_operand.hbm [shape: f32[8,512], index: 3, kind: output, shape index: {}]
  %s4 = sld [smem:[#allocation0]]
  $region34: #{tpu_custom_call.1} parent=0
    _
  %s6 = ssub.s32 1, %s4
  %s7 = scalar_select 0, %s6, %s4
  $region1: #{tpu_custom_call.1} parent=0
    #allocation2 [shape = 'u8[8192]{0}', space=vmem, size = 0x2000, scoped, tag = 'input window, operand 0, single buffered']
    #allocation3 [shape = 's32[1]{0}', space=sflag, size = 0x4, scoped, tag = 'scoped memory for tpu_custom_call.1']
    #allocation4 [shape = 's32[1]{0}', space=sflag, size = 0x4, scoped, tag = 'scoped memory for tpu_custom_call.1']
    #allocation5 [shape = 'u8[1572864]{0}', space=vmem, size = 0x180000, scoped, tag = 'input window, operand 1, single buffered']
    #allocation6 [shape = 's32[1]{0}', space=sflag, size = 0x4, scoped, tag = 'scoped memory for tpu_custom_call.1']
    #allocation7 [shape = 'u8[6144]{0}', space=vmem, size = 0x1800, scoped, tag = 'input window, operand 2, single buffered']
    #allocation8 [shape = 'u8[16384]{0}', space=vmem, size = 0x4000, scoped, tag = 'output window, operand 0, single buffered']
    %8 = vsyncpa [#allocation3], 0
    %9 = vsyncpa [#allocation6], 0
    %10 = vsyncpa [#allocation4], 0
    // Predicated region
    $region2: #{tpu_custom_call.1} parent=1 // pred_check
      _
    $region3: #{tpu_custom_call.1} parent=1 // pred_check_branch
      %12 = sbr.rel (0) target = $region5
    $region4: #{tpu_custom_call.1} parent=1 // pred_region
      %14 = vsyncadd [#allocation3], 0
      %s16 = sshll.u32 %s0, 4
      %s17 = int_to_ptr.hbm [resolvable:$true] %s16
      %s18 = sshll.u32 [#allocation2], 4
      %s19 = int_to_ptr.vmem [resolvable:$true] %s18
      %21 = dma.hbm_to_vmem [thread:$0]  %s17, 256, %s19, [#allocation3]
    $region5: #{tpu_custom_call.1} parent=1 // pred_fallthru
      _
    // Predicated region
    $region6: #{tpu_custom_call.1} parent=1 // pred_check
      _
    $region7: #{tpu_custom_call.1} parent=1 // pred_check_branch
      %23 = sbr.rel (0) target = $region9
    $region8: #{tpu_custom_call.1} parent=1 // pred_region
      %25 = vsyncadd [#allocation6], 0
      %s26 = sshll.u32 %s1, 4
      %s27 = int_to_ptr.hbm [resolvable:$true] %s26
      %s28 = sshll.u32 [#allocation5], 4
      %s29 = int_to_ptr.vmem [resolvable:$true] %s28
      %34 = dma.hbm_to_vmem [thread:$0]  %s27, 49152, %s29, [#allocation6], 256, 256, 16
    $region9: #{tpu_custom_call.1} parent=1 // pred_fallthru
      _
    // Predicated region
    $region10: #{tpu_custom_call.1} parent=1 // pred_check
      _
    $region11: #{tpu_custom_call.1} parent=1 // pred_check_branch
      %36 = sbr.rel (0) target = $region13
    $region12: #{tpu_custom_call.1} parent=1 // pred_region
      %38 = vsyncadd [#allocation6], 0
      %s39 = sshll.u32 %s2, 4
      %s40 = int_to_ptr.hbm [resolvable:$true] %s39
      %s41 = sshll.u32 [#allocation7], 4
      %s42 = int_to_ptr.vmem [resolvable:$true] %s41
      %47 = dma.hbm_to_vmem [thread:$0]  %s40, 192, %s42, [#allocation6], 64, 64, 4
    $region13: #{tpu_custom_call.1} parent=1 // pred_fallthru
      _
    // Predicated region
    $region14: #{tpu_custom_call.1} parent=1 // pred_check
      _
    $region15: #{tpu_custom_call.1} parent=1 // pred_check_branch
      %49 = sbr.rel (0) target = $region17
    $region16: #{tpu_custom_call.1} parent=1 // pred_region
      %51 = dma.done [#allocation3], 256
    $region17: #{tpu_custom_call.1} parent=1 // pred_fallthru
      _
    // Predicated region
    $region18: #{tpu_custom_call.1} parent=1 // pred_check
      _
    $region19: #{tpu_custom_call.1} parent=1 // pred_check_branch
      %53 = sbr.rel (0) target = $region21
    $region20: #{tpu_custom_call.1} parent=1 // pred_region
      %55 = dma.done [#allocation6], 49152
    $region21: #{tpu_custom_call.1} parent=1 // pred_fallthru
      _
    // Predicated region
    $region22: #{tpu_custom_call.1} parent=1 // pred_check
      _
    $region23: #{tpu_custom_call.1} parent=1 // pred_check_branch
      %57 = sbr.rel (0) target = $region25
    $region24: #{tpu_custom_call.1} parent=1 // pred_region
      %59 = dma.done [#allocation6], 192
    $region25: #{tpu_custom_call.1} parent=1 // pred_fallthru
      _
    %v60 = vld [vmem:[#allocation2] sm:$0xff]
    %v61 = vld [vmem:[#allocation2 + $0x8] sm:$0xff]
    %v62 = vld [vmem:[#allocation5] sm:$0xff]
    %v63 = vld [vmem:[#allocation5 + $0x8] sm:$0xff]
    %v64 = vld [vmem:[#allocation5 + $0x10] sm:$0xff]
    %v65 = vld [vmem:[#allocation5 + $0x18] sm:$0xff]
    %v66 = vld [vmem:[#allocation5 + $0x20] sm:$0xff]
    %v67 = vld [vmem:[#allocation5 + $0x28] sm:$0xff]
    %v68 = vld [vmem:[#allocation5 + $0x30] sm:$0xff]
    %v69 = vld [vmem:[#allocation5 + $0x38] sm:$0xff]
    %v70 = vld [vmem:[#allocation5 + $0x40] sm:$0xff]
    %v71 = vld [vmem:[#allocation5 + $0x48] sm:$0xff]
    %v72 = vld [vmem:[#allocation5 + $0x50] sm:$0xff]
    %v73 = vld [vmem:[#allocation5 + $0x58] sm:$0xff]
    %v74 = vld [vmem:[#allocation5 + $0x60] sm:$0xff]
    %v75 = vld [vmem:[#allocation5 + $0x68] sm:$0xff]
    %v76 = vld [vmem:[#allocation5 + $0x70] sm:$0xff]
    %v77 = vld [vmem:[#allocation5 + $0x78] sm:$0xff]
    %v78 = vld [vmem:[#allocation5 + $0x80] sm:$0xff]
    %v79 = vld [vmem:[#allocation5 + $0x88] sm:$0xff]
    %v80 = vld [vmem:[#allocation5 + $0x90] sm:$0xff]
    %v81 = vld [vmem:[#allocation5 + $0x98] sm:$0xff]
    %v82 = vld [vmem:[#allocation5 + $0xa0] sm:$0xff]
    %v83 = vld [vmem:[#allocation5 + $0xa8] sm:$0xff]
    %v84 = vld [vmem:[#allocation5 + $0xb0] sm:$0xff]
    %v85 = vld [vmem:[#allocation5 + $0xb8] sm:$0xff]
    %v86 = vld [vmem:[#allocation5 + $0xc0] sm:$0xff]
    %v87 = vld [vmem:[#allocation5 + $0xc8] sm:$0xff]
    %v88 = vld [vmem:[#allocation5 + $0xd0] sm:$0xff]
    %v89 = vld [vmem:[#allocation5 + $0xd8] sm:$0xff]
    %v90 = vld [vmem:[#allocation5 + $0xe0] sm:$0xff]
    %v91 = vld [vmem:[#allocation5 + $0xe8] sm:$0xff]
    %v92 = vld [vmem:[#allocation5 + $0xf0] sm:$0xff]
    %v93 = vld [vmem:[#allocation5 + $0xf8] sm:$0xff]
    %v94 = vld [vmem:[#allocation5 + $0x100] sm:$0xff]
    %v95 = vld [vmem:[#allocation5 + $0x108] sm:$0xff]
    %v96 = vld [vmem:[#allocation5 + $0x110] sm:$0xff]
    %v97 = vld [vmem:[#allocation5 + $0x118] sm:$0xff]
    %v98 = vld [vmem:[#allocation5 + $0x120] sm:$0xff]
    %v99 = vld [vmem:[#allocation5 + $0x128] sm:$0xff]
    %v100 = vld [vmem:[#allocation5 + $0x130] sm:$0xff]
    %v101 = vld [vmem:[#allocation5 + $0x138] sm:$0xff]
    %v102 = vld [vmem:[#allocation5 + $0x140] sm:$0xff]
    %v103 = vld [vmem:[#allocation5 + $0x148] sm:$0xff]
    %v104 = vld [vmem:[#allocation5 + $0x150] sm:$0xff]
    %v105 = vld [vmem:[#allocation5 + $0x158] sm:$0xff]
    %v106 = vld [vmem:[#allocation5 + $0x160] sm:$0xff]
    %v107 = vld [vmem:[#allocation5 + $0x168] sm:$0xff]
    %v108 = vld [vmem:[#allocation5 + $0x170] sm:$0xff]
    %v109 = vld [vmem:[#allocation5 + $0x178] sm:$0xff]
    %v110 = vld [vmem:[#allocation5 + $0x180] sm:$0xff]
    %v111 = vld [vmem:[#allocation5 + $0x188] sm:$0xff]
    %v112 = vld [vmem:[#allocation5 + $0x190] sm:$0xff]
    %v113 = vld [vmem:[#allocation5 + $0x198] sm:$0xff]
    %v114 = vld [vmem:[#allocation5 + $0x1a0] sm:$0xff]
    %v115 = vld [vmem:[#allocation5 + $0x1a8] sm:$0xff]
    %v116 = vld [vmem:[#allocation5 + $0x1b0] sm:$0xff]
    %v117 = vld [vmem:[#allocation5 + $0x1b8] sm:$0xff]
    %v118 = vld [vmem:[#allocation5 + $0x1c0] sm:$0xff]
    %v119 = vld [vmem:[#allocation5 + $0x1c8] sm:$0xff]
    %v120 = vld [vmem:[#allocation5 + $0x1d0] sm:$0xff]
    %v121 = vld [vmem:[#allocation5 + $0x1d8] sm:$0xff]
    %v122 = vld [vmem:[#allocation5 + $0x1e0] sm:$0xff]
    %v123 = vld [vmem:[#allocation5 + $0x1e8] sm:$0xff]
    %v124 = vld [vmem:[#allocation5 + $0x1f0] sm:$0xff]
    %v125 = vld [vmem:[#allocation5 + $0x1f8] sm:$0xff]
    %v126 = vld [vmem:[#allocation5 + $0x200] sm:$0xff]
    %v127 = vld [vmem:[#allocation5 + $0x208] sm:$0xff]
    %v128 = vld [vmem:[#allocation5 + $0x210] sm:$0xff]
    %v129 = vld [vmem:[#allocation5 + $0x218] sm:$0xff]
    %v130 = vld [vmem:[#allocation5 + $0x220] sm:$0xff]
    %v131 = vld [vmem:[#allocation5 + $0x228] sm:$0xff]
    %v132 = vld [vmem:[#allocation5 + $0x230] sm:$0xff]
    %v133 = vld [vmem:[#allocation5 + $0x238] sm:$0xff]
    %v134 = vld [vmem:[#allocation5 + $0x240] sm:$0xff]
    %v135 = vld [vmem:[#allocation5 + $0x248] sm:$0xff]
    %v136 = vld [vmem:[#allocation5 + $0x250] sm:$0xff]
    %v137 = vld [vmem:[#allocation5 + $0x258] sm:$0xff]
    %v138 = vld [vmem:[#allocation5 + $0x260] sm:$0xff]
    %v139 = vld [vmem:[#allocation5 + $0x268] sm:$0xff]
    %v140 = vld [vmem:[#allocation5 + $0x270] sm:$0xff]
    %v141 = vld [vmem:[#allocation5 + $0x278] sm:$0xff]
    %v142 = vld [vmem:[#allocation5 + $0x280] sm:$0xff]
    %v143 = vld [vmem:[#allocation5 + $0x288] sm:$0xff]
    %v144 = vld [vmem:[#allocation5 + $0x290] sm:$0xff]
    %v145 = vld [vmem:[#allocation5 + $0x298] sm:$0xff]
    %v146 = vld [vmem:[#allocation5 + $0x2a0] sm:$0xff]
    %v147 = vld [vmem:[#allocation5 + $0x2a8] sm:$0xff]
    %v148 = vld [vmem:[#allocation5 + $0x2b0] sm:$0xff]
    %v149 = vld [vmem:[#allocation5 + $0x2b8] sm:$0xff]
    %v150 = vld [vmem:[#allocation5 + $0x2c0] sm:$0xff]
    %v151 = vld [vmem:[#allocation5 + $0x2c8] sm:$0xff]
    %v152 = vld [vmem:[#allocation5 + $0x2d0] sm:$0xff]
    %v153 = vld [vmem:[#allocation5 + $0x2d8] sm:$0xff]
    %v154 = vld [vmem:[#allocation5 + $0x2e0] sm:$0xff]
    %v155 = vld [vmem:[#allocation5 + $0x2e8] sm:$0xff]
    %v156 = vld [vmem:[#allocation5 + $0x2f0] sm:$0xff]
    %v157 = vld [vmem:[#allocation5 + $0x2f8] sm:$0xff]
    %v158 = vld [vmem:[#allocation5 + $0x300] sm:$0xff]
    %v159 = vld [vmem:[#allocation5 + $0x308] sm:$0xff]
    %v160 = vld [vmem:[#allocation5 + $0x310] sm:$0xff]
    %v161 = vld [vmem:[#allocation5 + $0x318] sm:$0xff]
    %v162 = vld [vmem:[#allocation5 + $0x320] sm:$0xff]
    %v163 = vld [vmem:[#allocation5 + $0x328] sm:$0xff]
    %v164 = vld [vmem:[#allocation5 + $0x330] sm:$0xff]
    %v165 = vld [vmem:[#allocation5 + $0x338] sm:$0xff]
    %v166 = vld [vmem:[#allocation5 + $0x340] sm:$0xff]
    %v167 = vld [vmem:[#allocation5 + $0x348] sm:$0xff]
    %v168 = vld [vmem:[#allocation5 + $0x350] sm:$0xff]
    %v169 = vld [vmem:[#allocation5 + $0x358] sm:$0xff]
    %v170 = vld [vmem:[#allocation5 + $0x360] sm:$0xff]
    %v171 = vld [vmem:[#allocation5 + $0x368] sm:$0xff]
    %v172 = vld [vmem:[#allocation5 + $0x370] sm:$0xff]
    %v173 = vld [vmem:[#allocation5 + $0x378] sm:$0xff]
    %v174 = vld [vmem:[#allocation5 + $0x380] sm:$0xff]
    %v175 = vld [vmem:[#allocation5 + $0x388] sm:$0xff]
    %v176 = vld [vmem:[#allocation5 + $0x390] sm:$0xff]
    %v177 = vld [vmem:[#allocation5 + $0x398] sm:$0xff]
    %v178 = vld [vmem:[#allocation5 + $0x3a0] sm:$0xff]
    %v179 = vld [vmem:[#allocation5 + $0x3a8] sm:$0xff]
    %v180 = vld [vmem:[#allocation5 + $0x3b0] sm:$0xff]
    %v181 = vld [vmem:[#allocation5 + $0x3b8] sm:$0xff]
    %v182 = vld [vmem:[#allocation5 + $0x3c0] sm:$0xff]
    %v183 = vld [vmem:[#allocation5 + $0x3c8] sm:$0xff]
    %v184 = vld [vmem:[#allocation5 + $0x3d0] sm:$0xff]
    %v185 = vld [vmem:[#allocation5 + $0x3d8] sm:$0xff]
    %v186 = vld [vmem:[#allocation5 + $0x3e0] sm:$0xff]
    %v187 = vld [vmem:[#allocation5 + $0x3e8] sm:$0xff]
    %v188 = vld [vmem:[#allocation5 + $0x3f0] sm:$0xff]
    %v189 = vld [vmem:[#allocation5 + $0x3f8] sm:$0xff]
    %v190 = vld [vmem:[#allocation7] sm:$0xf]
    %v192 = vperm.slane %v190, 0
    %v193 = vperm.slane %v190, 1
    %v194 = vperm.slane %v190, 2
    %v195 = vperm.slane %v190, 3
    %v202 = vunpack.c.l.b16 %v60
    %v203 = vunpack.c.h.b16 %v60
    %v204 = vunpack.c.l.b16 %v61
    %v205 = vunpack.c.h.b16 %v61
    %v206 = vpack.c.b16 %v202, %v202
    %v207 = vpack.c.b16 %v203, %v203
    %v208 = vpack.c.b16 %v204, %v204
    %v209 = vpack.c.b16 %v205, %v205
    %v342 = vunpack.c.l.b16 %v62
    %v343 = vunpack.c.h.b16 %v62
    %v344 = vunpack.c.l.b16 %v63
    %v345 = vunpack.c.h.b16 %v63
    %v346 = vunpack.c.l.b16 %v64
    %v347 = vunpack.c.h.b16 %v64
    %v348 = vunpack.c.l.b16 %v65
    %v349 = vunpack.c.h.b16 %v65
    %v350 = vunpack.c.l.b16 %v66
    %v351 = vunpack.c.h.b16 %v66
    %v352 = vunpack.c.l.b16 %v67
    %v353 = vunpack.c.h.b16 %v67
    %v354 = vunpack.c.l.b16 %v68
    %v355 = vunpack.c.h.b16 %v68
    %v356 = vunpack.c.l.b16 %v69
    %v357 = vunpack.c.h.b16 %v69
    %v358 = vunpack.c.l.b16 %v70
    %v359 = vunpack.c.h.b16 %v70
    %v360 = vunpack.c.l.b16 %v71
    %v361 = vunpack.c.h.b16 %v71
    %v362 = vunpack.c.l.b16 %v72
    %v363 = vunpack.c.h.b16 %v72
    %v364 = vunpack.c.l.b16 %v73
    %v365 = vunpack.c.h.b16 %v73
    %v366 = vunpack.c.l.b16 %v74
    %v367 = vunpack.c.h.b16 %v74
    %v368 = vunpack.c.l.b16 %v75
    %v369 = vunpack.c.h.b16 %v75
    %v370 = vunpack.c.l.b16 %v76
    %v371 = vunpack.c.h.b16 %v76
    %v372 = vunpack.c.l.b16 %v77
    %v373 = vunpack.c.h.b16 %v77
    %v374 = vunpack.c.l.b16 %v78
    %v375 = vunpack.c.h.b16 %v78
    %v376 = vunpack.c.l.b16 %v79
    %v377 = vunpack.c.h.b16 %v79
    %v378 = vunpack.c.l.b16 %v80
    %v379 = vunpack.c.h.b16 %v80
    %v380 = vunpack.c.l.b16 %v81
    %v381 = vunpack.c.h.b16 %v81
    %v382 = vunpack.c.l.b16 %v82
    %v383 = vunpack.c.h.b16 %v82
    %v384 = vunpack.c.l.b16 %v83
    %v385 = vunpack.c.h.b16 %v83
    %v386 = vunpack.c.l.b16 %v84
    %v387 = vunpack.c.h.b16 %v84
    %v388 = vunpack.c.l.b16 %v85
    %v389 = vunpack.c.h.b16 %v85
    %v390 = vunpack.c.l.b16 %v86
    %v391 = vunpack.c.h.b16 %v86
    %v392 = vunpack.c.l.b16 %v87
    %v393 = vunpack.c.h.b16 %v87
    %v394 = vunpack.c.l.b16 %v88
    %v395 = vunpack.c.h.b16 %v88
    %v396 = vunpack.c.l.b16 %v89
    %v397 = vunpack.c.h.b16 %v89
    %v398 = vunpack.c.l.b16 %v90
    %v399 = vunpack.c.h.b16 %v90
    %v400 = vunpack.c.l.b16 %v91
    %v401 = vunpack.c.h.b16 %v91
    %v402 = vunpack.c.l.b16 %v92
    %v403 = vunpack.c.h.b16 %v92
    %v404 = vunpack.c.l.b16 %v93
    %v405 = vunpack.c.h.b16 %v93
    %v406 = vunpack.c.l.b16 %v94
    %v407 = vunpack.c.h.b16 %v94
    %v408 = vunpack.c.l.b16 %v95
    %v409 = vunpack.c.h.b16 %v95
    %v410 = vunpack.c.l.b16 %v96
    %v411 = vunpack.c.h.b16 %v96
    %v412 = vunpack.c.l.b16 %v97
    %v413 = vunpack.c.h.b16 %v97
    %v414 = vunpack.c.l.b16 %v98
    %v415 = vunpack.c.h.b16 %v98
    %v416 = vunpack.c.l.b16 %v99
    %v417 = vunpack.c.h.b16 %v99
    %v418 = vunpack.c.l.b16 %v100
    %v419 = vunpack.c.h.b16 %v100
    %v420 = vunpack.c.l.b16 %v101
    %v421 = vunpack.c.h.b16 %v101
    %v422 = vunpack.c.l.b16 %v102
    %v423 = vunpack.c.h.b16 %v102
    %v424 = vunpack.c.l.b16 %v103
    %v425 = vunpack.c.h.b16 %v103
    %v426 = vunpack.c.l.b16 %v104
    %v427 = vunpack.c.h.b16 %v104
    %v428 = vunpack.c.l.b16 %v105
    %v429 = vunpack.c.h.b16 %v105
    %v430 = vunpack.c.l.b16 %v106
    %v431 = vunpack.c.h.b16 %v106
    %v432 = vunpack.c.l.b16 %v107
    %v433 = vunpack.c.h.b16 %v107
    %v434 = vunpack.c.l.b16 %v108
    %v435 = vunpack.c.h.b16 %v108
    %v436 = vunpack.c.l.b16 %v109
    %v437 = vunpack.c.h.b16 %v109
    %v438 = vunpack.c.l.b16 %v110
    %v439 = vunpack.c.h.b16 %v110
    %v440 = vunpack.c.l.b16 %v111
    %v441 = vunpack.c.h.b16 %v111
    %v442 = vunpack.c.l.b16 %v112
    %v443 = vunpack.c.h.b16 %v112
    %v444 = vunpack.c.l.b16 %v113
    %v445 = vunpack.c.h.b16 %v113
    %v446 = vunpack.c.l.b16 %v114
    %v447 = vunpack.c.h.b16 %v114
    %v448 = vunpack.c.l.b16 %v115
    %v449 = vunpack.c.h.b16 %v115
    %v450 = vunpack.c.l.b16 %v116
    %v451 = vunpack.c.h.b16 %v116
    %v452 = vunpack.c.l.b16 %v117
    %v453 = vunpack.c.h.b16 %v117
    %v454 = vunpack.c.l.b16 %v118
    %v455 = vunpack.c.h.b16 %v118
    %v456 = vunpack.c.l.b16 %v119
    %v457 = vunpack.c.h.b16 %v119
    %v458 = vunpack.c.l.b16 %v120
    %v459 = vunpack.c.h.b16 %v120
    %v460 = vunpack.c.l.b16 %v121
    %v461 = vunpack.c.h.b16 %v121
    %v462 = vunpack.c.l.b16 %v122
    %v463 = vunpack.c.h.b16 %v122
    %v464 = vunpack.c.l.b16 %v123
    %v465 = vunpack.c.h.b16 %v123
    %v466 = vunpack.c.l.b16 %v124
    %v467 = vunpack.c.h.b16 %v124
    %v468 = vunpack.c.l.b16 %v125
    %v469 = vunpack.c.h.b16 %v125
    %v470 = vunpack.c.l.b16 %v126
    %v471 = vunpack.c.h.b16 %v126
    %v472 = vunpack.c.l.b16 %v127
    %v473 = vunpack.c.h.b16 %v127
    %v474 = vunpack.c.l.b16 %v128
    %v475 = vunpack.c.h.b16 %v128
    %v476 = vunpack.c.l.b16 %v129
    %v477 = vunpack.c.h.b16 %v129
    %v478 = vunpack.c.l.b16 %v130
    %v479 = vunpack.c.h.b16 %v130
    %v480 = vunpack.c.l.b16 %v131
    %v481 = vunpack.c.h.b16 %v131
    %v482 = vunpack.c.l.b16 %v132
    %v483 = vunpack.c.h.b16 %v132
    %v484 = vunpack.c.l.b16 %v133
    %v485 = vunpack.c.h.b16 %v133
    %v486 = vunpack.c.l.b16 %v134
    %v487 = vunpack.c.h.b16 %v134
    %v488 = vunpack.c.l.b16 %v135
    %v489 = vunpack.c.h.b16 %v135
    %v490 = vunpack.c.l.b16 %v136
    %v491 = vunpack.c.h.b16 %v136
    %v492 = vunpack.c.l.b16 %v137
    %v493 = vunpack.c.h.b16 %v137
    %v494 = vunpack.c.l.b16 %v138
    %v495 = vunpack.c.h.b16 %v138
    %v496 = vunpack.c.l.b16 %v139
    %v497 = vunpack.c.h.b16 %v139
    %v498 = vunpack.c.l.b16 %v140
    %v499 = vunpack.c.h.b16 %v140
    %v500 = vunpack.c.l.b16 %v141
    %v501 = vunpack.c.h.b16 %v141
    %v502 = vunpack.c.l.b16 %v142
    %v503 = vunpack.c.h.b16 %v142
    %v504 = vunpack.c.l.b16 %v143
    %v505 = vunpack.c.h.b16 %v143
    %v506 = vunpack.c.l.b16 %v144
    %v507 = vunpack.c.h.b16 %v144
    %v508 = vunpack.c.l.b16 %v145
    %v509 = vunpack.c.h.b16 %v145
    %v510 = vunpack.c.l.b16 %v146
    %v511 = vunpack.c.h.b16 %v146
    %v512 = vunpack.c.l.b16 %v147
    %v513 = vunpack.c.h.b16 %v147
    %v514 = vunpack.c.l.b16 %v148
    %v515 = vunpack.c.h.b16 %v148
    %v516 = vunpack.c.l.b16 %v149
    %v517 = vunpack.c.h.b16 %v149
    %v518 = vunpack.c.l.b16 %v150
    %v519 = vunpack.c.h.b16 %v150
    %v520 = vunpack.c.l.b16 %v151
    %v521 = vunpack.c.h.b16 %v151
    %v522 = vunpack.c.l.b16 %v152
    %v523 = vunpack.c.h.b16 %v152
    %v524 = vunpack.c.l.b16 %v153
    %v525 = vunpack.c.h.b16 %v153
    %v526 = vunpack.c.l.b16 %v154
    %v527 = vunpack.c.h.b16 %v154
    %v528 = vunpack.c.l.b16 %v155
    %v529 = vunpack.c.h.b16 %v155
    %v530 = vunpack.c.l.b16 %v156
    %v531 = vunpack.c.h.b16 %v156
    %v532 = vunpack.c.l.b16 %v157
    %v533 = vunpack.c.h.b16 %v157
    %v534 = vunpack.c.l.b16 %v158
    %v535 = vunpack.c.h.b16 %v158
    %v536 = vunpack.c.l.b16 %v159
    %v537 = vunpack.c.h.b16 %v159
    %v538 = vunpack.c.l.b16 %v160
    %v539 = vunpack.c.h.b16 %v160
    %v540 = vunpack.c.l.b16 %v161
    %v541 = vunpack.c.h.b16 %v161
    %v542 = vunpack.c.l.b16 %v162
    %v543 = vunpack.c.h.b16 %v162
    %v544 = vunpack.c.l.b16 %v163
    %v545 = vunpack.c.h.b16 %v163
    %v546 = vunpack.c.l.b16 %v164
    %v547 = vunpack.c.h.b16 %v164
    %v548 = vunpack.c.l.b16 %v165
    %v549 = vunpack.c.h.b16 %v165
    %v550 = vunpack.c.l.b16 %v166
    %v551 = vunpack.c.h.b16 %v166
    %v552 = vunpack.c.l.b16 %v167
    %v553 = vunpack.c.h.b16 %v167
    %v554 = vunpack.c.l.b16 %v168
    %v555 = vunpack.c.h.b16 %v168
    %v556 = vunpack.c.l.b16 %v169
    %v557 = vunpack.c.h.b16 %v169
    %v558 = vunpack.c.l.b16 %v170
    %v559 = vunpack.c.h.b16 %v170
    %v560 = vunpack.c.l.b16 %v171
    %v561 = vunpack.c.h.b16 %v171
    %v562 = vunpack.c.l.b16 %v172
    %v563 = vunpack.c.h.b16 %v172
    %v564 = vunpack.c.l.b16 %v173
    %v565 = vunpack.c.h.b16 %v173
    %v566 = vunpack.c.l.b16 %v174
    %v567 = vunpack.c.h.b16 %v174
    %v568 = vunpack.c.l.b16 %v175
    %v569 = vunpack.c.h.b16 %v175
    %v570 = vunpack.c.l.b16 %v176
    %v571 = vunpack.c.h.b16 %v176
    %v572 = vunpack.c.l.b16 %v177
    %v573 = vunpack.c.h.b16 %v177
    %v574 = vunpack.c.l.b16 %v178
    %v575 = vunpack.c.h.b16 %v178
    %v576 = vunpack.c.l.b16 %v179
    %v577 = vunpack.c.h.b16 %v179
    %v578 = vunpack.c.l.b16 %v180
    %v579 = vunpack.c.h.b16 %v180
    %v580 = vunpack.c.l.b16 %v181
    %v581 = vunpack.c.h.b16 %v181
    %v582 = vunpack.c.l.b16 %v182
    %v583 = vunpack.c.h.b16 %v182
    %v584 = vunpack.c.l.b16 %v183
    %v585 = vunpack.c.h.b16 %v183
    %v586 = vunpack.c.l.b16 %v184
    %v587 = vunpack.c.h.b16 %v184
    %v588 = vunpack.c.l.b16 %v185
    %v589 = vunpack.c.h.b16 %v185
    %v590 = vunpack.c.l.b16 %v186
    %v591 = vunpack.c.h.b16 %v186
    %v592 = vunpack.c.l.b16 %v187
    %v593 = vunpack.c.h.b16 %v187
    %v594 = vunpack.c.l.b16 %v188
    %v595 = vunpack.c.h.b16 %v188
    %v596 = vunpack.c.l.b16 %v189
    %v597 = vunpack.c.h.b16 %v189
    %v598 = vpack.c.b16 %v346, %v342
    %v599 = vpack.c.b16 %v347, %v343
    %v600 = vpack.c.b16 %v348, %v344
    %v601 = vpack.c.b16 %v349, %v345
    %v602 = vpack.c.b16 %v354, %v350
    %v603 = vpack.c.b16 %v355, %v351
    %v604 = vpack.c.b16 %v356, %v352
    %v605 = vpack.c.b16 %v357, %v353
    %v606 = vpack.c.b16 %v362, %v358
    %v607 = vpack.c.b16 %v363, %v359
    %v608 = vpack.c.b16 %v364, %v360
    %v609 = vpack.c.b16 %v365, %v361
    %v610 = vpack.c.b16 %v370, %v366
    %v611 = vpack.c.b16 %v371, %v367
    %v612 = vpack.c.b16 %v372, %v368
    %v613 = vpack.c.b16 %v373, %v369
    %v614 = vpack.c.b16 %v378, %v374
    %v615 = vpack.c.b16 %v379, %v375
    %v616 = vpack.c.b16 %v380, %v376
    %v617 = vpack.c.b16 %v381, %v377
    %v618 = vpack.c.b16 %v386, %v382
    %v619 = vpack.c.b16 %v387, %v383
    %v620 = vpack.c.b16 %v388, %v384
    %v621 = vpack.c.b16 %v389, %v385
    %v622 = vpack.c.b16 %v394, %v390
    %v623 = vpack.c.b16 %v395, %v391
    %v624 = vpack.c.b16 %v396, %v392
    %v625 = vpack.c.b16 %v397, %v393
    %v626 = vpack.c.b16 %v402, %v398
    %v627 = vpack.c.b16 %v403, %v399
    %v628 = vpack.c.b16 %v404, %v400
    %v629 = vpack.c.b16 %v405, %v401
    %v630 = vpack.c.b16 %v410, %v406
    %v631 = vpack.c.b16 %v411, %v407
    %v632 = vpack.c.b16 %v412, %v408
    %v633 = vpack.c.b16 %v413, %v409
    %v634 = vpack.c.b16 %v418, %v414
    %v635 = vpack.c.b16 %v419, %v415
    %v636 = vpack.c.b16 %v420, %v416
    %v637 = vpack.c.b16 %v421, %v417
    %v638 = vpack.c.b16 %v426, %v422
    %v639 = vpack.c.b16 %v427, %v423
    %v640 = vpack.c.b16 %v428, %v424
    %v641 = vpack.c.b16 %v429, %v425
    %v642 = vpack.c.b16 %v434, %v430
    %v643 = vpack.c.b16 %v435, %v431
    %v644 = vpack.c.b16 %v436, %v432
    %v645 = vpack.c.b16 %v437, %v433
    %v646 = vpack.c.b16 %v442, %v438
    %v647 = vpack.c.b16 %v443, %v439
    %v648 = vpack.c.b16 %v444, %v440
    %v649 = vpack.c.b16 %v445, %v441
    %v650 = vpack.c.b16 %v450, %v446
    %v651 = vpack.c.b16 %v451, %v447
    %v652 = vpack.c.b16 %v452, %v448
    %v653 = vpack.c.b16 %v453, %v449
    %v654 = vpack.c.b16 %v458, %v454
    %v655 = vpack.c.b16 %v459, %v455
    %v656 = vpack.c.b16 %v460, %v456
    %v657 = vpack.c.b16 %v461, %v457
    %v658 = vpack.c.b16 %v466, %v462
    %v659 = vpack.c.b16 %v467, %v463
    %v660 = vpack.c.b16 %v468, %v464
    %v661 = vpack.c.b16 %v469, %v465
    %v662 = vpack.c.b16 %v474, %v470
    %v663 = vpack.c.b16 %v475, %v471
    %v664 = vpack.c.b16 %v476, %v472
    %v665 = vpack.c.b16 %v477, %v473
    %v666 = vpack.c.b16 %v482, %v478
    %v667 = vpack.c.b16 %v483, %v479
    %v668 = vpack.c.b16 %v484, %v480
    %v669 = vpack.c.b16 %v485, %v481
    %v670 = vpack.c.b16 %v490, %v486
    %v671 = vpack.c.b16 %v491, %v487
    %v672 = vpack.c.b16 %v492, %v488
    %v673 = vpack.c.b16 %v493, %v489
    %v674 = vpack.c.b16 %v498, %v494
    %v675 = vpack.c.b16 %v499, %v495
    %v676 = vpack.c.b16 %v500, %v496
    %v677 = vpack.c.b16 %v501, %v497
    %v678 = vpack.c.b16 %v506, %v502
    %v679 = vpack.c.b16 %v507, %v503
    %v680 = vpack.c.b16 %v508, %v504
    %v681 = vpack.c.b16 %v509, %v505
    %v682 = vpack.c.b16 %v514, %v510
    %v683 = vpack.c.b16 %v515, %v511
    %v684 = vpack.c.b16 %v516, %v512
    %v685 = vpack.c.b16 %v517, %v513
    %v686 = vpack.c.b16 %v522, %v518
    %v687 = vpack.c.b16 %v523, %v519
    %v688 = vpack.c.b16 %v524, %v520
    %v689 = vpack.c.b16 %v525, %v521
    %v690 = vpack.c.b16 %v530, %v526
    %v691 = vpack.c.b16 %v531, %v527
    %v692 = vpack.c.b16 %v532, %v528
    %v693 = vpack.c.b16 %v533, %v529
    %v694 = vpack.c.b16 %v538, %v534
    %v695 = vpack.c.b16 %v539, %v535
    %v696 = vpack.c.b16 %v540, %v536
    %v697 = vpack.c.b16 %v541, %v537
    %v698 = vpack.c.b16 %v546, %v542
    %v699 = vpack.c.b16 %v547, %v543
    %v700 = vpack.c.b16 %v548, %v544
    %v701 = vpack.c.b16 %v549, %v545
    %v702 = vpack.c.b16 %v554, %v550
    %v703 = vpack.c.b16 %v555, %v551
    %v704 = vpack.c.b16 %v556, %v552
    %v705 = vpack.c.b16 %v557, %v553
    %v706 = vpack.c.b16 %v562, %v558
    %v707 = vpack.c.b16 %v563, %v559
    %v708 = vpack.c.b16 %v564, %v560
    %v709 = vpack.c.b16 %v565, %v561
    %v710 = vpack.c.b16 %v570, %v566
    %v711 = vpack.c.b16 %v571, %v567
    %v712 = vpack.c.b16 %v572, %v568
    %v713 = vpack.c.b16 %v573, %v569
    %v714 = vpack.c.b16 %v578, %v574
    %v715 = vpack.c.b16 %v579, %v575
    %v716 = vpack.c.b16 %v580, %v576
    %v717 = vpack.c.b16 %v581, %v577
    %v718 = vpack.c.b16 %v586, %v582
    %v719 = vpack.c.b16 %v587, %v583
    %v720 = vpack.c.b16 %v588, %v584
    %v721 = vpack.c.b16 %v589, %v585
    %v722 = vpack.c.b16 %v594, %v590
    %v723 = vpack.c.b16 %v595, %v591
    %v724 = vpack.c.b16 %v596, %v592
    %v725 = vpack.c.b16 %v597, %v593
    %854 = vmatpush.bf16.msra.mxu0 %v626
    %855 = vmatpush.bf16.msra.mxu0 %v622
    %856 = vmatpush.bf16.msra.mxu0 %v618
    %857 = vmatpush.bf16.msra.mxu0 %v614
    %858 = vmatpush.bf16.msra.mxu0 %v610
    %859 = vmatpush.bf16.msra.mxu0 %v606
    %860 = vmatpush.bf16.msra.mxu0 %v602
    %861 = vmatpush.bf16.msra.mxu0 %v598
    %862 = vmatmul.bf16.gmra.mxu0 %v206
    %v863 = vpop.f32.mrf.mxu0
    %v864 = vadd.f32 %v192, %v863
    %v865 = vpop.f32.mrf.mxu0
    %866 = vdwg.mxu0
    %867 = vmatpush.bf16.msra.mxu0 %v658
    %868 = vmatpush.bf16.msra.mxu0 %v654
    %869 = vmatpush.bf16.msra.mxu0 %v650
    %870 = vmatpush.bf16.msra.mxu0 %v646
    %871 = vmatpush.bf16.msra.mxu0 %v642
    %872 = vmatpush.bf16.msra.mxu0 %v638
    %873 = vmatpush.bf16.msra.mxu0 %v634
    %874 = vmatpush.bf16.msra.mxu0 %v630
    %875 = vmatmul.bf16.gmra.mxu0 %v207
    %v876 = vpop.f32.mrf.mxu0
    %v877 = vadd.f32 %v864, %v876
    %v878 = vpop.f32.mrf.mxu0
    %879 = vdwg.mxu0
    %880 = vmatpush.bf16.msra.mxu0 %v690
    %881 = vmatpush.bf16.msra.mxu0 %v686
    %882 = vmatpush.bf16.msra.mxu0 %v682
    %883 = vmatpush.bf16.msra.mxu0 %v678
    %884 = vmatpush.bf16.msra.mxu0 %v674
    %885 = vmatpush.bf16.msra.mxu0 %v670
    %886 = vmatpush.bf16.msra.mxu0 %v666
    %887 = vmatpush.bf16.msra.mxu0 %v662
    %888 = vmatmul.bf16.gmra.mxu0 %v208
    %v889 = vpop.f32.mrf.mxu0
    %v890 = vadd.f32 %v877, %v889
    %v891 = vpop.f32.mrf.mxu0
    %892 = vdwg.mxu0
    %893 = vmatpush.bf16.msra.mxu0 %v722
    %894 = vmatpush.bf16.msra.mxu0 %v718
    %895 = vmatpush.bf16.msra.mxu0 %v714
    %896 = vmatpush.bf16.msra.mxu0 %v710
    %897 = vmatpush.bf16.msra.mxu0 %v706
    %898 = vmatpush.bf16.msra.mxu0 %v702
    %899 = vmatpush.bf16.msra.mxu0 %v698
    %900 = vmatpush.bf16.msra.mxu0 %v694
    %901 = vmatmul.bf16.gmra.mxu0 %v209
    %v902 = vpop.f32.mrf.mxu0
    %v903 = vadd.f32 %v890, %v902
    %v904 = vpop.f32.mrf.mxu0
    %905 = vdwg.mxu0
    %906 = vmatpush.bf16.msra.mxu0 %v627
    %907 = vmatpush.bf16.msra.mxu0 %v623
    %908 = vmatpush.bf16.msra.mxu0 %v619
    %909 = vmatpush.bf16.msra.mxu0 %v615
    %910 = vmatpush.bf16.msra.mxu0 %v611
    %911 = vmatpush.bf16.msra.mxu0 %v607
    %912 = vmatpush.bf16.msra.mxu0 %v603
    %913 = vmatpush.bf16.msra.mxu0 %v599
    %914 = vmatmul.bf16.gmra.mxu0 %v206
    %v915 = vpop.f32.mrf.mxu0
    %v916 = vadd.f32 %v193, %v915
    %v917 = vpop.f32.mrf.mxu0
    %918 = vdwg.mxu0
    %919 = vmatpush.bf16.msra.mxu0 %v659
    %920 = vmatpush.bf16.msra.mxu0 %v655
    %921 = vmatpush.bf16.msra.mxu0 %v651
    %922 = vmatpush.bf16.msra.mxu0 %v647
    %923 = vmatpush.bf16.msra.mxu0 %v643
    %924 = vmatpush.bf16.msra.mxu0 %v639
    %925 = vmatpush.bf16.msra.mxu0 %v635
    %926 = vmatpush.bf16.msra.mxu0 %v631
    %927 = vmatmul.bf16.gmra.mxu0 %v207
    %v928 = vpop.f32.mrf.mxu0
    %v929 = vadd.f32 %v916, %v928
    %v930 = vpop.f32.mrf.mxu0
    %931 = vdwg.mxu0
    %932 = vmatpush.bf16.msra.mxu0 %v691
    %933 = vmatpush.bf16.msra.mxu0 %v687
    %934 = vmatpush.bf16.msra.mxu0 %v683
    %935 = vmatpush.bf16.msra.mxu0 %v679
    %936 = vmatpush.bf16.msra.mxu0 %v675
    %937 = vmatpush.bf16.msra.mxu0 %v671
    %938 = vmatpush.bf16.msra.mxu0 %v667
    %939 = vmatpush.bf16.msra.mxu0 %v663
    %940 = vmatmul.bf16.gmra.mxu0 %v208
    %v941 = vpop.f32.mrf.mxu0
    %v942 = vadd.f32 %v929, %v941
    %v943 = vpop.f32.mrf.mxu0
    %944 = vdwg.mxu0
    %945 = vmatpush.bf16.msra.mxu0 %v723
    %946 = vmatpush.bf16.msra.mxu0 %v719
    %947 = vmatpush.bf16.msra.mxu0 %v715
    %948 = vmatpush.bf16.msra.mxu0 %v711
    %949 = vmatpush.bf16.msra.mxu0 %v707
    %950 = vmatpush.bf16.msra.mxu0 %v703
    %951 = vmatpush.bf16.msra.mxu0 %v699
    %952 = vmatpush.bf16.msra.mxu0 %v695
    %953 = vmatmul.bf16.gmra.mxu0 %v209
    %v954 = vpop.f32.mrf.mxu0
    %v955 = vadd.f32 %v942, %v954
    %v956 = vpop.f32.mrf.mxu0
    %957 = vdwg.mxu0
    %958 = vmatpush.bf16.msra.mxu0 %v628
    %959 = vmatpush.bf16.msra.mxu0 %v624
    %960 = vmatpush.bf16.msra.mxu0 %v620
    %961 = vmatpush.bf16.msra.mxu0 %v616
    %962 = vmatpush.bf16.msra.mxu0 %v612
    %963 = vmatpush.bf16.msra.mxu0 %v608
    %964 = vmatpush.bf16.msra.mxu0 %v604
    %965 = vmatpush.bf16.msra.mxu0 %v600
    %966 = vmatmul.bf16.gmra.mxu0 %v206
    %v967 = vpop.f32.mrf.mxu0
    %v968 = vadd.f32 %v194, %v967
    %v969 = vpop.f32.mrf.mxu0
    %970 = vdwg.mxu0
    %971 = vmatpush.bf16.msra.mxu0 %v660
    %972 = vmatpush.bf16.msra.mxu0 %v656
    %973 = vmatpush.bf16.msra.mxu0 %v652
    %974 = vmatpush.bf16.msra.mxu0 %v648
    %975 = vmatpush.bf16.msra.mxu0 %v644
    %976 = vmatpush.bf16.msra.mxu0 %v640
    %977 = vmatpush.bf16.msra.mxu0 %v636
    %978 = vmatpush.bf16.msra.mxu0 %v632
    %979 = vmatmul.bf16.gmra.mxu0 %v207
    %v980 = vpop.f32.mrf.mxu0
    %v981 = vadd.f32 %v968, %v980
    %v982 = vpop.f32.mrf.mxu0
    %983 = vdwg.mxu0
    %984 = vmatpush.bf16.msra.mxu0 %v692
    %985 = vmatpush.bf16.msra.mxu0 %v688
    %986 = vmatpush.bf16.msra.mxu0 %v684
    %987 = vmatpush.bf16.msra.mxu0 %v680
    %988 = vmatpush.bf16.msra.mxu0 %v676
    %989 = vmatpush.bf16.msra.mxu0 %v672
    %990 = vmatpush.bf16.msra.mxu0 %v668
    %991 = vmatpush.bf16.msra.mxu0 %v664
    %992 = vmatmul.bf16.gmra.mxu0 %v208
    %v993 = vpop.f32.mrf.mxu0
    %v994 = vadd.f32 %v981, %v993
    %v995 = vpop.f32.mrf.mxu0
    %996 = vdwg.mxu0
    %997 = vmatpush.bf16.msra.mxu0 %v724
    %998 = vmatpush.bf16.msra.mxu0 %v720
    %999 = vmatpush.bf16.msra.mxu0 %v716
    %1000 = vmatpush.bf16.msra.mxu0 %v712
    %1001 = vmatpush.bf16.msra.mxu0 %v708
    %1002 = vmatpush.bf16.msra.mxu0 %v704
    %1003 = vmatpush.bf16.msra.mxu0 %v700
    %1004 = vmatpush.bf16.msra.mxu0 %v696
    %1005 = vmatmul.bf16.gmra.mxu0 %v209
    %v1006 = vpop.f32.mrf.mxu0
    %v1007 = vadd.f32 %v994, %v1006
    %v1008 = vpop.f32.mrf.mxu0
    %1009 = vdwg.mxu0
    %1010 = vmatpush.bf16.msra.mxu0 %v629
    %1011 = vmatpush.bf16.msra.mxu0 %v625
    %1012 = vmatpush.bf16.msra.mxu0 %v621
    %1013 = vmatpush.bf16.msra.mxu0 %v617
    %1014 = vmatpush.bf16.msra.mxu0 %v613
    %1015 = vmatpush.bf16.msra.mxu0 %v609
    %1016 = vmatpush.bf16.msra.mxu0 %v605
    %1017 = vmatpush.bf16.msra.mxu0 %v601
    %1018 = vmatmul.bf16.gmra.mxu0 %v206
    %v1019 = vpop.f32.mrf.mxu0
    %v1020 = vadd.f32 %v195, %v1019
    %v1021 = vpop.f32.mrf.mxu0
    %1022 = vdwg.mxu0
    %1023 = vmatpush.bf16.msra.mxu0 %v661
    %1024 = vmatpush.bf16.msra.mxu0 %v657
    %1025 = vmatpush.bf16.msra.mxu0 %v653
    %1026 = vmatpush.bf16.msra.mxu0 %v649
    %1027 = vmatpush.bf16.msra.mxu0 %v645
    %1028 = vmatpush.bf16.msra.mxu0 %v641
    %1029 = vmatpush.bf16.msra.mxu0 %v637
    %1030 = vmatpush.bf16.msra.mxu0 %v633
    %1031 = vmatmul.bf16.gmra.mxu0 %v207
    %v1032 = vpop.f32.mrf.mxu0
    %v1033 = vadd.f32 %v1020, %v1032
    %v1034 = vpop.f32.mrf.mxu0
    %1035 = vdwg.mxu0
    %1036 = vmatpush.bf16.msra.mxu0 %v693
    %1037 = vmatpush.bf16.msra.mxu0 %v689
    %1038 = vmatpush.bf16.msra.mxu0 %v685
    %1039 = vmatpush.bf16.msra.mxu0 %v681
    %1040 = vmatpush.bf16.msra.mxu0 %v677
    %1041 = vmatpush.bf16.msra.mxu0 %v673
    %1042 = vmatpush.bf16.msra.mxu0 %v669
    %1043 = vmatpush.bf16.msra.mxu0 %v665
    %1044 = vmatmul.bf16.gmra.mxu0 %v208
    %v1045 = vpop.f32.mrf.mxu0
    %v1046 = vadd.f32 %v1033, %v1045
    %v1047 = vpop.f32.mrf.mxu0
    %1048 = vdwg.mxu0
    %1049 = vmatpush.bf16.msra.mxu0 %v725
    %1050 = vmatpush.bf16.msra.mxu0 %v721
    %1051 = vmatpush.bf16.msra.mxu0 %v717
    %1052 = vmatpush.bf16.msra.mxu0 %v713
    %1053 = vmatpush.bf16.msra.mxu0 %v709
    %1054 = vmatpush.bf16.msra.mxu0 %v705
    %1055 = vmatpush.bf16.msra.mxu0 %v701
    %1056 = vmatpush.bf16.msra.mxu0 %v697
    %1057 = vmatmul.bf16.gmra.mxu0 %v209
    %v1058 = vpop.f32.mrf.mxu0
    %v1059 = vadd.f32 %v1046, %v1058
    %v1060 = vpop.f32.mrf.mxu0
    %1061 = vdwg.mxu0
    %v1062 = vmax.f32 %v903, 0.0
    %v1063 = vmax.f32 %v955, 0.0
    %v1064 = vmax.f32 %v1007, 0.0
    %v1065 = vmax.f32 %v1059, 0.0
    %v1066 = vpack.c.bf16 %v1062, %v1062
    %v1067 = vpack.c.bf16 %v1063, %v1063
    %v1068 = vpack.c.bf16 %v1064, %v1064
    %v1069 = vpack.c.bf16 %v1065, %v1065
    %s1070 = scalar_lea.vmem [#allocation5], 1024
    %v1071 = vld [vmem:[%s1070] sm:$0xff]
    %v1072 = vld [vmem:[%s1070 + $0x8] sm:$0xff]
    %v1073 = vld [vmem:[%s1070 + $0x10] sm:$0xff]
    %v1074 = vld [vmem:[%s1070 + $0x18] sm:$0xff]
    %v1075 = vld [vmem:[%s1070 + $0x20] sm:$0xff]
    %v1076 = vld [vmem:[%s1070 + $0x28] sm:$0xff]
    %v1077 = vld [vmem:[%s1070 + $0x30] sm:$0xff]
    %v1078 = vld [vmem:[%s1070 + $0x38] sm:$0xff]
    %v1079 = vld [vmem:[%s1070 + $0x40] sm:$0xff]
    %v1080 = vld [vmem:[%s1070 + $0x48] sm:$0xff]
    %v1081 = vld [vmem:[%s1070 + $0x50] sm:$0xff]
    %v1082 = vld [vmem:[%s1070 + $0x58] sm:$0xff]
    %v1083 = vld [vmem:[%s1070 + $0x60] sm:$0xff]
    %v1084 = vld [vmem:[%s1070 + $0x68] sm:$0xff]
    %v1085 = vld [vmem:[%s1070 + $0x70] sm:$0xff]
    %v1086 = vld [vmem:[%s1070 + $0x78] sm:$0xff]
    %v1087 = vld [vmem:[%s1070 + $0x80] sm:$0xff]
    %v1088 = vld [vmem:[%s1070 + $0x88] sm:$0xff]
    %v1089 = vld [vmem:[%s1070 + $0x90] sm:$0xff]
    %v1090 = vld [vmem:[%s1070 + $0x98] sm:$0xff]
    %v1091 = vld [vmem:[%s1070 + $0xa0] sm:$0xff]
    %v1092 = vld [vmem:[%s1070 + $0xa8] sm:$0xff]
    %v1093 = vld [vmem:[%s1070 + $0xb0] sm:$0xff]
    %v1094 = vld [vmem:[%s1070 + $0xb8] sm:$0xff]
    %v1095 = vld [vmem:[%s1070 + $0xc0] sm:$0xff]
    %v1096 = vld [vmem:[%s1070 + $0xc8] sm:$0xff]
    %v1097 = vld [vmem:[%s1070 + $0xd0] sm:$0xff]
    %v1098 = vld [vmem:[%s1070 + $0xd8] sm:$0xff]
    %v1099 = vld [vmem:[%s1070 + $0xe0] sm:$0xff]
    %v1100 = vld [vmem:[%s1070 + $0xe8] sm:$0xff]
    %v1101 = vld [vmem:[%s1070 + $0xf0] sm:$0xff]
    %v1102 = vld [vmem:[%s1070 + $0xf8] sm:$0xff]
    %v1103 = vld [vmem:[%s1070 + $0x100] sm:$0xff]
    %v1104 = vld [vmem:[%s1070 + $0x108] sm:$0xff]
    %v1105 = vld [vmem:[%s1070 + $0x110] sm:$0xff]
    %v1106 = vld [vmem:[%s1070 + $0x118] sm:$0xff]
    %v1107 = vld [vmem:[%s1070 + $0x120] sm:$0xff]
    %v1108 = vld [vmem:[%s1070 + $0x128] sm:$0xff]
    %v1109 = vld [vmem:[%s1070 + $0x130] sm:$0xff]
    %v1110 = vld [vmem:[%s1070 + $0x138] sm:$0xff]
    %v1111 = vld [vmem:[%s1070 + $0x140] sm:$0xff]
    %v1112 = vld [vmem:[%s1070 + $0x148] sm:$0xff]
    %v1113 = vld [vmem:[%s1070 + $0x150] sm:$0xff]
    %v1114 = vld [vmem:[%s1070 + $0x158] sm:$0xff]
    %v1115 = vld [vmem:[%s1070 + $0x160] sm:$0xff]
    %v1116 = vld [vmem:[%s1070 + $0x168] sm:$0xff]
    %v1117 = vld [vmem:[%s1070 + $0x170] sm:$0xff]
    %v1118 = vld [vmem:[%s1070 + $0x178] sm:$0xff]
    %v1119 = vld [vmem:[%s1070 + $0x180] sm:$0xff]
    %v1120 = vld [vmem:[%s1070 + $0x188] sm:$0xff]
    %v1121 = vld [vmem:[%s1070 + $0x190] sm:$0xff]
    %v1122 = vld [vmem:[%s1070 + $0x198] sm:$0xff]
    %v1123 = vld [vmem:[%s1070 + $0x1a0] sm:$0xff]
    %v1124 = vld [vmem:[%s1070 + $0x1a8] sm:$0xff]
    %v1125 = vld [vmem:[%s1070 + $0x1b0] sm:$0xff]
    %v1126 = vld [vmem:[%s1070 + $0x1b8] sm:$0xff]
    %v1127 = vld [vmem:[%s1070 + $0x1c0] sm:$0xff]
    %v1128 = vld [vmem:[%s1070 + $0x1c8] sm:$0xff]
    %v1129 = vld [vmem:[%s1070 + $0x1d0] sm:$0xff]
    %v1130 = vld [vmem:[%s1070 + $0x1d8] sm:$0xff]
    %v1131 = vld [vmem:[%s1070 + $0x1e0] sm:$0xff]
    %v1132 = vld [vmem:[%s1070 + $0x1e8] sm:$0xff]
    %v1133 = vld [vmem:[%s1070 + $0x1f0] sm:$0xff]
    %v1134 = vld [vmem:[%s1070 + $0x1f8] sm:$0xff]
    %v1135 = vld [vmem:[%s1070 + $0x200] sm:$0xff]
    %v1136 = vld [vmem:[%s1070 + $0x208] sm:$0xff]
    %v1137 = vld [vmem:[%s1070 + $0x210] sm:$0xff]
    %v1138 = vld [vmem:[%s1070 + $0x218] sm:$0xff]
    %v1139 = vld [vmem:[%s1070 + $0x220] sm:$0xff]
    %v1140 = vld [vmem:[%s1070 + $0x228] sm:$0xff]
    %v1141 = vld [vmem:[%s1070 + $0x230] sm:$0xff]
    %v1142 = vld [vmem:[%s1070 + $0x238] sm:$0xff]
    %v1143 = vld [vmem:[%s1070 + $0x240] sm:$0xff]
    %v1144 = vld [vmem:[%s1070 + $0x248] sm:$0xff]
    %v1145 = vld [vmem:[%s1070 + $0x250] sm:$0xff]
    %v1146 = vld [vmem:[%s1070 + $0x258] sm:$0xff]
    %v1147 = vld [vmem:[%s1070 + $0x260] sm:$0xff]
    %v1148 = vld [vmem:[%s1070 + $0x268] sm:$0xff]
    %v1149 = vld [vmem:[%s1070 + $0x270] sm:$0xff]
    %v1150 = vld [vmem:[%s1070 + $0x278] sm:$0xff]
    %v1151 = vld [vmem:[%s1070 + $0x280] sm:$0xff]
    %v1152 = vld [vmem:[%s1070 + $0x288] sm:$0xff]
    %v1153 = vld [vmem:[%s1070 + $0x290] sm:$0xff]
    %v1154 = vld [vmem:[%s1070 + $0x298] sm:$0xff]
    %v1155 = vld [vmem:[%s1070 + $0x2a0] sm:$0xff]
    %v1156 = vld [vmem:[%s1070 + $0x2a8] sm:$0xff]
    %v1157 = vld [vmem:[%s1070 + $0x2b0] sm:$0xff]
    %v1158 = vld [vmem:[%s1070 + $0x2b8] sm:$0xff]
    %v1159 = vld [vmem:[%s1070 + $0x2c0] sm:$0xff]
    %v1160 = vld [vmem:[%s1070 + $0x2c8] sm:$0xff]
    %v1161 = vld [vmem:[%s1070 + $0x2d0] sm:$0xff]
    %v1162 = vld [vmem:[%s1070 + $0x2d8] sm:$0xff]
    %v1163 = vld [vmem:[%s1070 + $0x2e0] sm:$0xff]
    %v1164 = vld [vmem:[%s1070 + $0x2e8] sm:$0xff]
    %v1165 = vld [vmem:[%s1070 + $0x2f0] sm:$0xff]
    %v1166 = vld [vmem:[%s1070 + $0x2f8] sm:$0xff]
    %v1167 = vld [vmem:[%s1070 + $0x300] sm:$0xff]
    %v1168 = vld [vmem:[%s1070 + $0x308] sm:$0xff]
    %v1169 = vld [vmem:[%s1070 + $0x310] sm:$0xff]
    %v1170 = vld [vmem:[%s1070 + $0x318] sm:$0xff]
    %v1171 = vld [vmem:[%s1070 + $0x320] sm:$0xff]
    %v1172 = vld [vmem:[%s1070 + $0x328] sm:$0xff]
    %v1173 = vld [vmem:[%s1070 + $0x330] sm:$0xff]
    %v1174 = vld [vmem:[%s1070 + $0x338] sm:$0xff]
    %v1175 = vld [vmem:[%s1070 + $0x340] sm:$0xff]
    %v1176 = vld [vmem:[%s1070 + $0x348] sm:$0xff]
    %v1177 = vld [vmem:[%s1070 + $0x350] sm:$0xff]
    %v1178 = vld [vmem:[%s1070 + $0x358] sm:$0xff]
    %v1179 = vld [vmem:[%s1070 + $0x360] sm:$0xff]
    %v1180 = vld [vmem:[%s1070 + $0x368] sm:$0xff]
    %v1181 = vld [vmem:[%s1070 + $0x370] sm:$0xff]
    %v1182 = vld [vmem:[%s1070 + $0x378] sm:$0xff]
    %v1183 = vld [vmem:[%s1070 + $0x380] sm:$0xff]
    %v1184 = vld [vmem:[%s1070 + $0x388] sm:$0xff]
    %v1185 = vld [vmem:[%s1070 + $0x390] sm:$0xff]
    %v1186 = vld [vmem:[%s1070 + $0x398] sm:$0xff]
    %v1187 = vld [vmem:[%s1070 + $0x3a0] sm:$0xff]
    %v1188 = vld [vmem:[%s1070 + $0x3a8] sm:$0xff]
    %v1189 = vld [vmem:[%s1070 + $0x3b0] sm:$0xff]
    %v1190 = vld [vmem:[%s1070 + $0x3b8] sm:$0xff]
    %v1191 = vld [vmem:[%s1070 + $0x3c0] sm:$0xff]
    %v1192 = vld [vmem:[%s1070 + $0x3c8] sm:$0xff]
    %v1193 = vld [vmem:[%s1070 + $0x3d0] sm:$0xff]
    %v1194 = vld [vmem:[%s1070 + $0x3d8] sm:$0xff]
    %v1195 = vld [vmem:[%s1070 + $0x3e0] sm:$0xff]
    %v1196 = vld [vmem:[%s1070 + $0x3e8] sm:$0xff]
    %v1197 = vld [vmem:[%s1070 + $0x3f0] sm:$0xff]
    %v1198 = vld [vmem:[%s1070 + $0x3f8] sm:$0xff]
    %s1199 = scalar_lea.vmem [#allocation7], 4
    %v1200 = vld [vmem:[%s1199] sm:$0xf]
    %v1202 = vperm.slane %v1200, 0
    %v1203 = vperm.slane %v1200, 1
    %v1204 = vperm.slane %v1200, 2
    %v1205 = vperm.slane %v1200, 3
    %v1338 = vunpack.c.l.b16 %v1071
    %v1339 = vunpack.c.h.b16 %v1071
    %v1340 = vunpack.c.l.b16 %v1072
    %v1341 = vunpack.c.h.b16 %v1072
    %v1342 = vunpack.c.l.b16 %v1073
    %v1343 = vunpack.c.h.b16 %v1073
    %v1344 = vunpack.c.l.b16 %v1074
    %v1345 = vunpack.c.h.b16 %v1074
    %v1346 = vunpack.c.l.b16 %v1075
    %v1347 = vunpack.c.h.b16 %v1075
    %v1348 = vunpack.c.l.b16 %v1076
    %v1349 = vunpack.c.h.b16 %v1076
    %v1350 = vunpack.c.l.b16 %v1077
    %v1351 = vunpack.c.h.b16 %v1077
    %v1352 = vunpack.c.l.b16 %v1078
    %v1353 = vunpack.c.h.b16 %v1078
    %v1354 = vunpack.c.l.b16 %v1079
    %v1355 = vunpack.c.h.b16 %v1079
    %v1356 = vunpack.c.l.b16 %v1080
    %v1357 = vunpack.c.h.b16 %v1080
    %v1358 = vunpack.c.l.b16 %v1081
    %v1359 = vunpack.c.h.b16 %v1081
    %v1360 = vunpack.c.l.b16 %v1082
    %v1361 = vunpack.c.h.b16 %v1082
    %v1362 = vunpack.c.l.b16 %v1083
    %v1363 = vunpack.c.h.b16 %v1083
    %v1364 = vunpack.c.l.b16 %v1084
    %v1365 = vunpack.c.h.b16 %v1084
    %v1366 = vunpack.c.l.b16 %v1085
    %v1367 = vunpack.c.h.b16 %v1085
    %v1368 = vunpack.c.l.b16 %v1086
    %v1369 = vunpack.c.h.b16 %v1086
    %v1370 = vunpack.c.l.b16 %v1087
    %v1371 = vunpack.c.h.b16 %v1087
    %v1372 = vunpack.c.l.b16 %v1088
    %v1373 = vunpack.c.h.b16 %v1088
    %v1374 = vunpack.c.l.b16 %v1089
    %v1375 = vunpack.c.h.b16 %v1089
    %v1376 = vunpack.c.l.b16 %v1090
    %v1377 = vunpack.c.h.b16 %v1090
    %v1378 = vunpack.c.l.b16 %v1091
    %v1379 = vunpack.c.h.b16 %v1091
    %v1380 = vunpack.c.l.b16 %v1092
    %v1381 = vunpack.c.h.b16 %v1092
    %v1382 = vunpack.c.l.b16 %v1093
    %v1383 = vunpack.c.h.b16 %v1093
    %v1384 = vunpack.c.l.b16 %v1094
    %v1385 = vunpack.c.h.b16 %v1094
    %v1386 = vunpack.c.l.b16 %v1095
    %v1387 = vunpack.c.h.b16 %v1095
    %v1388 = vunpack.c.l.b16 %v1096
    %v1389 = vunpack.c.h.b16 %v1096
    %v1390 = vunpack.c.l.b16 %v1097
    %v1391 = vunpack.c.h.b16 %v1097
    %v1392 = vunpack.c.l.b16 %v1098
    %v1393 = vunpack.c.h.b16 %v1098
    %v1394 = vunpack.c.l.b16 %v1099
    %v1395 = vunpack.c.h.b16 %v1099
    %v1396 = vunpack.c.l.b16 %v1100
    %v1397 = vunpack.c.h.b16 %v1100
    %v1398 = vunpack.c.l.b16 %v1101
    %v1399 = vunpack.c.h.b16 %v1101
    %v1400 = vunpack.c.l.b16 %v1102
    %v1401 = vunpack.c.h.b16 %v1102
    %v1402 = vunpack.c.l.b16 %v1103
    %v1403 = vunpack.c.h.b16 %v1103
    %v1404 = vunpack.c.l.b16 %v1104
    %v1405 = vunpack.c.h.b16 %v1104
    %v1406 = vunpack.c.l.b16 %v1105
    %v1407 = vunpack.c.h.b16 %v1105
    %v1408 = vunpack.c.l.b16 %v1106
    %v1409 = vunpack.c.h.b16 %v1106
    %v1410 = vunpack.c.l.b16 %v1107
    %v1411 = vunpack.c.h.b16 %v1107
    %v1412 = vunpack.c.l.b16 %v1108
    %v1413 = vunpack.c.h.b16 %v1108
    %v1414 = vunpack.c.l.b16 %v1109
    %v1415 = vunpack.c.h.b16 %v1109
    %v1416 = vunpack.c.l.b16 %v1110
    %v1417 = vunpack.c.h.b16 %v1110
    %v1418 = vunpack.c.l.b16 %v1111
    %v1419 = vunpack.c.h.b16 %v1111
    %v1420 = vunpack.c.l.b16 %v1112
    %v1421 = vunpack.c.h.b16 %v1112
    %v1422 = vunpack.c.l.b16 %v1113
    %v1423 = vunpack.c.h.b16 %v1113
    %v1424 = vunpack.c.l.b16 %v1114
    %v1425 = vunpack.c.h.b16 %v1114
    %v1426 = vunpack.c.l.b16 %v1115
    %v1427 = vunpack.c.h.b16 %v1115
    %v1428 = vunpack.c.l.b16 %v1116
    %v1429 = vunpack.c.h.b16 %v1116
    %v1430 = vunpack.c.l.b16 %v1117
    %v1431 = vunpack.c.h.b16 %v1117
    %v1432 = vunpack.c.l.b16 %v1118
    %v1433 = vunpack.c.h.b16 %v1118
    %v1434 = vunpack.c.l.b16 %v1119
    %v1435 = vunpack.c.h.b16 %v1119
    %v1436 = vunpack.c.l.b16 %v1120
    %v1437 = vunpack.c.h.b16 %v1120
    %v1438 = vunpack.c.l.b16 %v1121
    %v1439 = vunpack.c.h.b16 %v1121
    %v1440 = vunpack.c.l.b16 %v1122
    %v1441 = vunpack.c.h.b16 %v1122
    %v1442 = vunpack.c.l.b16 %v1123
    %v1443 = vunpack.c.h.b16 %v1123
    %v1444 = vunpack.c.l.b16 %v1124
    %v1445 = vunpack.c.h.b16 %v1124
    %v1446 = vunpack.c.l.b16 %v1125
    %v1447 = vunpack.c.h.b16 %v1125
    %v1448 = vunpack.c.l.b16 %v1126
    %v1449 = vunpack.c.h.b16 %v1126
    %v1450 = vunpack.c.l.b16 %v1127
    %v1451 = vunpack.c.h.b16 %v1127
    %v1452 = vunpack.c.l.b16 %v1128
    %v1453 = vunpack.c.h.b16 %v1128
    %v1454 = vunpack.c.l.b16 %v1129
    %v1455 = vunpack.c.h.b16 %v1129
    %v1456 = vunpack.c.l.b16 %v1130
    %v1457 = vunpack.c.h.b16 %v1130
    %v1458 = vunpack.c.l.b16 %v1131
    %v1459 = vunpack.c.h.b16 %v1131
    %v1460 = vunpack.c.l.b16 %v1132
    %v1461 = vunpack.c.h.b16 %v1132
    %v1462 = vunpack.c.l.b16 %v1133
    %v1463 = vunpack.c.h.b16 %v1133
    %v1464 = vunpack.c.l.b16 %v1134
    %v1465 = vunpack.c.h.b16 %v1134
    %v1466 = vunpack.c.l.b16 %v1135
    %v1467 = vunpack.c.h.b16 %v1135
    %v1468 = vunpack.c.l.b16 %v1136
    %v1469 = vunpack.c.h.b16 %v1136
    %v1470 = vunpack.c.l.b16 %v1137
    %v1471 = vunpack.c.h.b16 %v1137
    %v1472 = vunpack.c.l.b16 %v1138
    %v1473 = vunpack.c.h.b16 %v1138
    %v1474 = vunpack.c.l.b16 %v1139
    %v1475 = vunpack.c.h.b16 %v1139
    %v1476 = vunpack.c.l.b16 %v1140
    %v1477 = vunpack.c.h.b16 %v1140
    %v1478 = vunpack.c.l.b16 %v1141
    %v1479 = vunpack.c.h.b16 %v1141
    %v1480 = vunpack.c.l.b16 %v1142
    %v1481 = vunpack.c.h.b16 %v1142
    %v1482 = vunpack.c.l.b16 %v1143
    %v1483 = vunpack.c.h.b16 %v1143
    %v1484 = vunpack.c.l.b16 %v1144
    %v1485 = vunpack.c.h.b16 %v1144
    %v1486 = vunpack.c.l.b16 %v1145
    %v1487 = vunpack.c.h.b16 %v1145
    %v1488 = vunpack.c.l.b16 %v1146
    %v1489 = vunpack.c.h.b16 %v1146
    %v1490 = vunpack.c.l.b16 %v1147
    %v1491 = vunpack.c.h.b16 %v1147
    %v1492 = vunpack.c.l.b16 %v1148
    %v1493 = vunpack.c.h.b16 %v1148
    %v1494 = vunpack.c.l.b16 %v1149
    %v1495 = vunpack.c.h.b16 %v1149
    %v1496 = vunpack.c.l.b16 %v1150
    %v1497 = vunpack.c.h.b16 %v1150
    %v1498 = vunpack.c.l.b16 %v1151
    %v1499 = vunpack.c.h.b16 %v1151
    %v1500 = vunpack.c.l.b16 %v1152
    %v1501 = vunpack.c.h.b16 %v1152
    %v1502 = vunpack.c.l.b16 %v1153
    %v1503 = vunpack.c.h.b16 %v1153
    %v1504 = vunpack.c.l.b16 %v1154
    %v1505 = vunpack.c.h.b16 %v1154
    %v1506 = vunpack.c.l.b16 %v1155
    %v1507 = vunpack.c.h.b16 %v1155
    %v1508 = vunpack.c.l.b16 %v1156
    %v1509 = vunpack.c.h.b16 %v1156
    %v1510 = vunpack.c.l.b16 %v1157
    %v1511 = vunpack.c.h.b16 %v1157
    %v1512 = vunpack.c.l.b16 %v1158
    %v1513 = vunpack.c.h.b16 %v1158
    %v1514 = vunpack.c.l.b16 %v1159
    %v1515 = vunpack.c.h.b16 %v1159
    %v1516 = vunpack.c.l.b16 %v1160
    %v1517 = vunpack.c.h.b16 %v1160
    %v1518 = vunpack.c.l.b16 %v1161
    %v1519 = vunpack.c.h.b16 %v1161
    %v1520 = vunpack.c.l.b16 %v1162
    %v1521 = vunpack.c.h.b16 %v1162
    %v1522 = vunpack.c.l.b16 %v1163
    %v1523 = vunpack.c.h.b16 %v1163
    %v1524 = vunpack.c.l.b16 %v1164
    %v1525 = vunpack.c.h.b16 %v1164
    %v1526 = vunpack.c.l.b16 %v1165
    %v1527 = vunpack.c.h.b16 %v1165
    %v1528 = vunpack.c.l.b16 %v1166
    %v1529 = vunpack.c.h.b16 %v1166
    %v1530 = vunpack.c.l.b16 %v1167
    %v1531 = vunpack.c.h.b16 %v1167
    %v1532 = vunpack.c.l.b16 %v1168
    %v1533 = vunpack.c.h.b16 %v1168
    %v1534 = vunpack.c.l.b16 %v1169
    %v1535 = vunpack.c.h.b16 %v1169
    %v1536 = vunpack.c.l.b16 %v1170
    %v1537 = vunpack.c.h.b16 %v1170
    %v1538 = vunpack.c.l.b16 %v1171
    %v1539 = vunpack.c.h.b16 %v1171
    %v1540 = vunpack.c.l.b16 %v1172
    %v1541 = vunpack.c.h.b16 %v1172
    %v1542 = vunpack.c.l.b16 %v1173
    %v1543 = vunpack.c.h.b16 %v1173
    %v1544 = vunpack.c.l.b16 %v1174
    %v1545 = vunpack.c.h.b16 %v1174
    %v1546 = vunpack.c.l.b16 %v1175
    %v1547 = vunpack.c.h.b16 %v1175
    %v1548 = vunpack.c.l.b16 %v1176
    %v1549 = vunpack.c.h.b16 %v1176
    %v1550 = vunpack.c.l.b16 %v1177
    %v1551 = vunpack.c.h.b16 %v1177
    %v1552 = vunpack.c.l.b16 %v1178
    %v1553 = vunpack.c.h.b16 %v1178
    %v1554 = vunpack.c.l.b16 %v1179
    %v1555 = vunpack.c.h.b16 %v1179
    %v1556 = vunpack.c.l.b16 %v1180
    %v1557 = vunpack.c.h.b16 %v1180
    %v1558 = vunpack.c.l.b16 %v1181
    %v1559 = vunpack.c.h.b16 %v1181
    %v1560 = vunpack.c.l.b16 %v1182
    %v1561 = vunpack.c.h.b16 %v1182
    %v1562 = vunpack.c.l.b16 %v1183
    %v1563 = vunpack.c.h.b16 %v1183
    %v1564 = vunpack.c.l.b16 %v1184
    %v1565 = vunpack.c.h.b16 %v1184
    %v1566 = vunpack.c.l.b16 %v1185
    %v1567 = vunpack.c.h.b16 %v1185
    %v1568 = vunpack.c.l.b16 %v1186
    %v1569 = vunpack.c.h.b16 %v1186
    %v1570 = vunpack.c.l.b16 %v1187
    %v1571 = vunpack.c.h.b16 %v1187
    %v1572 = vunpack.c.l.b16 %v1188
    %v1573 = vunpack.c.h.b16 %v1188
    %v1574 = vunpack.c.l.b16 %v1189
    %v1575 = vunpack.c.h.b16 %v1189
    %v1576 = vunpack.c.l.b16 %v1190
    %v1577 = vunpack.c.h.b16 %v1190
    %v1578 = vunpack.c.l.b16 %v1191
    %v1579 = vunpack.c.h.b16 %v1191
    %v1580 = vunpack.c.l.b16 %v1192
    %v1581 = vunpack.c.h.b16 %v1192
    %v1582 = vunpack.c.l.b16 %v1193
    %v1583 = vunpack.c.h.b16 %v1193
    %v1584 = vunpack.c.l.b16 %v1194
    %v1585 = vunpack.c.h.b16 %v1194
    %v1586 = vunpack.c.l.b16 %v1195
    %v1587 = vunpack.c.h.b16 %v1195
    %v1588 = vunpack.c.l.b16 %v1196
    %v1589 = vunpack.c.h.b16 %v1196
    %v1590 = vunpack.c.l.b16 %v1197
    %v1591 = vunpack.c.h.b16 %v1197
    %v1592 = vunpack.c.l.b16 %v1198
    %v1593 = vunpack.c.h.b16 %v1198
    %v1594 = vpack.c.b16 %v1342, %v1338
    %v1595 = vpack.c.b16 %v1343, %v1339
    %v1596 = vpack.c.b16 %v1344, %v1340
    %v1597 = vpack.c.b16 %v1345, %v1341
    %v1598 = vpack.c.b16 %v1350, %v1346
    %v1599 = vpack.c.b16 %v1351, %v1347
    %v1600 = vpack.c.b16 %v1352, %v1348
    %v1601 = vpack.c.b16 %v1353, %v1349
    %v1602 = vpack.c.b16 %v1358, %v1354
    %v1603 = vpack.c.b16 %v1359, %v1355
    %v1604 = vpack.c.b16 %v1360, %v1356
    %v1605 = vpack.c.b16 %v1361, %v1357
    %v1606 = vpack.c.b16 %v1366, %v1362
    %v1607 = vpack.c.b16 %v1367, %v1363
    %v1608 = vpack.c.b16 %v1368, %v1364
    %v1609 = vpack.c.b16 %v1369, %v1365
    %v1610 = vpack.c.b16 %v1374, %v1370
    %v1611 = vpack.c.b16 %v1375, %v1371
    %v1612 = vpack.c.b16 %v1376, %v1372
    %v1613 = vpack.c.b16 %v1377, %v1373
    %v1614 = vpack.c.b16 %v1382, %v1378
    %v1615 = vpack.c.b16 %v1383, %v1379
    %v1616 = vpack.c.b16 %v1384, %v1380
    %v1617 = vpack.c.b16 %v1385, %v1381
    %v1618 = vpack.c.b16 %v1390, %v1386
    %v1619 = vpack.c.b16 %v1391, %v1387
    %v1620 = vpack.c.b16 %v1392, %v1388
    %v1621 = vpack.c.b16 %v1393, %v1389
    %v1622 = vpack.c.b16 %v1398, %v1394
    %v1623 = vpack.c.b16 %v1399, %v1395
    %v1624 = vpack.c.b16 %v1400, %v1396
    %v1625 = vpack.c.b16 %v1401, %v1397
    %v1626 = vpack.c.b16 %v1406, %v1402
    %v1627 = vpack.c.b16 %v1407, %v1403
    %v1628 = vpack.c.b16 %v1408, %v1404
    %v1629 = vpack.c.b16 %v1409, %v1405
    %v1630 = vpack.c.b16 %v1414, %v1410
    %v1631 = vpack.c.b16 %v1415, %v1411
    %v1632 = vpack.c.b16 %v1416, %v1412
    %v1633 = vpack.c.b16 %v1417, %v1413
    %v1634 = vpack.c.b16 %v1422, %v1418
    %v1635 = vpack.c.b16 %v1423, %v1419
    %v1636 = vpack.c.b16 %v1424, %v1420
    %v1637 = vpack.c.b16 %v1425, %v1421
    %v1638 = vpack.c.b16 %v1430, %v1426
    %v1639 = vpack.c.b16 %v1431, %v1427
    %v1640 = vpack.c.b16 %v1432, %v1428
    %v1641 = vpack.c.b16 %v1433, %v1429
    %v1642 = vpack.c.b16 %v1438, %v1434
    %v1643 = vpack.c.b16 %v1439, %v1435
    %v1644 = vpack.c.b16 %v1440, %v1436
    %v1645 = vpack.c.b16 %v1441, %v1437
    %v1646 = vpack.c.b16 %v1446, %v1442
    %v1647 = vpack.c.b16 %v1447, %v1443
    %v1648 = vpack.c.b16 %v1448, %v1444
    %v1649 = vpack.c.b16 %v1449, %v1445
    %v1650 = vpack.c.b16 %v1454, %v1450
    %v1651 = vpack.c.b16 %v1455, %v1451
    %v1652 = vpack.c.b16 %v1456, %v1452
    %v1653 = vpack.c.b16 %v1457, %v1453
    %v1654 = vpack.c.b16 %v1462, %v1458
    %v1655 = vpack.c.b16 %v1463, %v1459
    %v1656 = vpack.c.b16 %v1464, %v1460
    %v1657 = vpack.c.b16 %v1465, %v1461
    %v1658 = vpack.c.b16 %v1470, %v1466
    %v1659 = vpack.c.b16 %v1471, %v1467
    %v1660 = vpack.c.b16 %v1472, %v1468
    %v1661 = vpack.c.b16 %v1473, %v1469
    %v1662 = vpack.c.b16 %v1478, %v1474
    %v1663 = vpack.c.b16 %v1479, %v1475
    %v1664 = vpack.c.b16 %v1480, %v1476
    %v1665 = vpack.c.b16 %v1481, %v1477
    %v1666 = vpack.c.b16 %v1486, %v1482
    %v1667 = vpack.c.b16 %v1487, %v1483
    %v1668 = vpack.c.b16 %v1488, %v1484
    %v1669 = vpack.c.b16 %v1489, %v1485
    %v1670 = vpack.c.b16 %v1494, %v1490
    %v1671 = vpack.c.b16 %v1495, %v1491
    %v1672 = vpack.c.b16 %v1496, %v1492
    %v1673 = vpack.c.b16 %v1497, %v1493
    %v1674 = vpack.c.b16 %v1502, %v1498
    %v1675 = vpack.c.b16 %v1503, %v1499
    %v1676 = vpack.c.b16 %v1504, %v1500
    %v1677 = vpack.c.b16 %v1505, %v1501
    %v1678 = vpack.c.b16 %v1510, %v1506
    %v1679 = vpack.c.b16 %v1511, %v1507
    %v1680 = vpack.c.b16 %v1512, %v1508
    %v1681 = vpack.c.b16 %v1513, %v1509
    %v1682 = vpack.c.b16 %v1518, %v1514
    %v1683 = vpack.c.b16 %v1519, %v1515
    %v1684 = vpack.c.b16 %v1520, %v1516
    %v1685 = vpack.c.b16 %v1521, %v1517
    %v1686 = vpack.c.b16 %v1526, %v1522
    %v1687 = vpack.c.b16 %v1527, %v1523
    %v1688 = vpack.c.b16 %v1528, %v1524
    %v1689 = vpack.c.b16 %v1529, %v1525
    %v1690 = vpack.c.b16 %v1534, %v1530
    %v1691 = vpack.c.b16 %v1535, %v1531
    %v1692 = vpack.c.b16 %v1536, %v1532
    %v1693 = vpack.c.b16 %v1537, %v1533
    %v1694 = vpack.c.b16 %v1542, %v1538
    %v1695 = vpack.c.b16 %v1543, %v1539
    %v1696 = vpack.c.b16 %v1544, %v1540
    %v1697 = vpack.c.b16 %v1545, %v1541
    %v1698 = vpack.c.b16 %v1550, %v1546
    %v1699 = vpack.c.b16 %v1551, %v1547
    %v1700 = vpack.c.b16 %v1552, %v1548
    %v1701 = vpack.c.b16 %v1553, %v1549
    %v1702 = vpack.c.b16 %v1558, %v1554
    %v1703 = vpack.c.b16 %v1559, %v1555
    %v1704 = vpack.c.b16 %v1560, %v1556
    %v1705 = vpack.c.b16 %v1561, %v1557
    %v1706 = vpack.c.b16 %v1566, %v1562
    %v1707 = vpack.c.b16 %v1567, %v1563
    %v1708 = vpack.c.b16 %v1568, %v1564
    %v1709 = vpack.c.b16 %v1569, %v1565
    %v1710 = vpack.c.b16 %v1574, %v1570
    %v1711 = vpack.c.b16 %v1575, %v1571
    %v1712 = vpack.c.b16 %v1576, %v1572
    %v1713 = vpack.c.b16 %v1577, %v1573
    %v1714 = vpack.c.b16 %v1582, %v1578
    %v1715 = vpack.c.b16 %v1583, %v1579
    %v1716 = vpack.c.b16 %v1584, %v1580
    %v1717 = vpack.c.b16 %v1585, %v1581
    %v1718 = vpack.c.b16 %v1590, %v1586
    %v1719 = vpack.c.b16 %v1591, %v1587
    %v1720 = vpack.c.b16 %v1592, %v1588
    %v1721 = vpack.c.b16 %v1593, %v1589
    %1850 = vmatpush.bf16.msra.mxu0 %v1622
    %1851 = vmatpush.bf16.msra.mxu0 %v1618
    %1852 = vmatpush.bf16.msra.mxu0 %v1614
    %1853 = vmatpush.bf16.msra.mxu0 %v1610
    %1854 = vmatpush.bf16.msra.mxu0 %v1606
    %1855 = vmatpush.bf16.msra.mxu0 %v1602
    %1856 = vmatpush.bf16.msra.mxu0 %v1598
    %1857 = vmatpush.bf16.msra.mxu0 %v1594
    %1858 = vmatmul.bf16.gmra.mxu0 %v1066
    %v1859 = vpop.f32.mrf.mxu0
    %v1860 = vadd.f32 %v1202, %v1859
    %v1861 = vpop.f32.mrf.mxu0
    %1862 = vdwg.mxu0
    %1863 = vmatpush.bf16.msra.mxu0 %v1654
    %1864 = vmatpush.bf16.msra.mxu0 %v1650
    %1865 = vmatpush.bf16.msra.mxu0 %v1646
    %1866 = vmatpush.bf16.msra.mxu0 %v1642
    %1867 = vmatpush.bf16.msra.mxu0 %v1638
    %1868 = vmatpush.bf16.msra.mxu0 %v1634
    %1869 = vmatpush.bf16.msra.mxu0 %v1630
    %1870 = vmatpush.bf16.msra.mxu0 %v1626
    %1871 = vmatmul.bf16.gmra.mxu0 %v1067
    %v1872 = vpop.f32.mrf.mxu0
    %v1873 = vadd.f32 %v1860, %v1872
    %v1874 = vpop.f32.mrf.mxu0
    %1875 = vdwg.mxu0
    %1876 = vmatpush.bf16.msra.mxu0 %v1686
    %1877 = vmatpush.bf16.msra.mxu0 %v1682
    %1878 = vmatpush.bf16.msra.mxu0 %v1678
    %1879 = vmatpush.bf16.msra.mxu0 %v1674
    %1880 = vmatpush.bf16.msra.mxu0 %v1670
    %1881 = vmatpush.bf16.msra.mxu0 %v1666
    %1882 = vmatpush.bf16.msra.mxu0 %v1662
    %1883 = vmatpush.bf16.msra.mxu0 %v1658
    %1884 = vmatmul.bf16.gmra.mxu0 %v1068
    %v1885 = vpop.f32.mrf.mxu0
    %v1886 = vadd.f32 %v1873, %v1885
    %v1887 = vpop.f32.mrf.mxu0
    %1888 = vdwg.mxu0
    %1889 = vmatpush.bf16.msra.mxu0 %v1718
    %1890 = vmatpush.bf16.msra.mxu0 %v1714
    %1891 = vmatpush.bf16.msra.mxu0 %v1710
    %1892 = vmatpush.bf16.msra.mxu0 %v1706
    %1893 = vmatpush.bf16.msra.mxu0 %v1702
    %1894 = vmatpush.bf16.msra.mxu0 %v1698
    %1895 = vmatpush.bf16.msra.mxu0 %v1694
    %1896 = vmatpush.bf16.msra.mxu0 %v1690
    %1897 = vmatmul.bf16.gmra.mxu0 %v1069
    %v1898 = vpop.f32.mrf.mxu0
    %v1899 = vadd.f32 %v1886, %v1898
    %v1900 = vpop.f32.mrf.mxu0
    %1901 = vdwg.mxu0
    %1902 = vmatpush.bf16.msra.mxu0 %v1623
    %1903 = vmatpush.bf16.msra.mxu0 %v1619
    %1904 = vmatpush.bf16.msra.mxu0 %v1615
    %1905 = vmatpush.bf16.msra.mxu0 %v1611
    %1906 = vmatpush.bf16.msra.mxu0 %v1607
    %1907 = vmatpush.bf16.msra.mxu0 %v1603
    %1908 = vmatpush.bf16.msra.mxu0 %v1599
    %1909 = vmatpush.bf16.msra.mxu0 %v1595
    %1910 = vmatmul.bf16.gmra.mxu0 %v1066
    %v1911 = vpop.f32.mrf.mxu0
    %v1912 = vadd.f32 %v1203, %v1911
    %v1913 = vpop.f32.mrf.mxu0
    %1914 = vdwg.mxu0
    %1915 = vmatpush.bf16.msra.mxu0 %v1655
    %1916 = vmatpush.bf16.msra.mxu0 %v1651
    %1917 = vmatpush.bf16.msra.mxu0 %v1647
    %1918 = vmatpush.bf16.msra.mxu0 %v1643
    %1919 = vmatpush.bf16.msra.mxu0 %v1639
    %1920 = vmatpush.bf16.msra.mxu0 %v1635
    %1921 = vmatpush.bf16.msra.mxu0 %v1631
    %1922 = vmatpush.bf16.msra.mxu0 %v1627
    %1923 = vmatmul.bf16.gmra.mxu0 %v1067
    %v1924 = vpop.f32.mrf.mxu0
    %v1925 = vadd.f32 %v1912, %v1924
    %v1926 = vpop.f32.mrf.mxu0
    %1927 = vdwg.mxu0
    %1928 = vmatpush.bf16.msra.mxu0 %v1687
    %1929 = vmatpush.bf16.msra.mxu0 %v1683
    %1930 = vmatpush.bf16.msra.mxu0 %v1679
    %1931 = vmatpush.bf16.msra.mxu0 %v1675
    %1932 = vmatpush.bf16.msra.mxu0 %v1671
    %1933 = vmatpush.bf16.msra.mxu0 %v1667
    %1934 = vmatpush.bf16.msra.mxu0 %v1663
    %1935 = vmatpush.bf16.msra.mxu0 %v1659
    %1936 = vmatmul.bf16.gmra.mxu0 %v1068
    %v1937 = vpop.f32.mrf.mxu0
    %v1938 = vadd.f32 %v1925, %v1937
    %v1939 = vpop.f32.mrf.mxu0
    %1940 = vdwg.mxu0
    %1941 = vmatpush.bf16.msra.mxu0 %v1719
    %1942 = vmatpush.bf16.msra.mxu0 %v1715
    %1943 = vmatpush.bf16.msra.mxu0 %v1711
    %1944 = vmatpush.bf16.msra.mxu0 %v1707
    %1945 = vmatpush.bf16.msra.mxu0 %v1703
    %1946 = vmatpush.bf16.msra.mxu0 %v1699
    %1947 = vmatpush.bf16.msra.mxu0 %v1695
    %1948 = vmatpush.bf16.msra.mxu0 %v1691
    %1949 = vmatmul.bf16.gmra.mxu0 %v1069
    %v1950 = vpop.f32.mrf.mxu0
    %v1951 = vadd.f32 %v1938, %v1950
    %v1952 = vpop.f32.mrf.mxu0
    %1953 = vdwg.mxu0
    %1954 = vmatpush.bf16.msra.mxu0 %v1624
    %1955 = vmatpush.bf16.msra.mxu0 %v1620
    %1956 = vmatpush.bf16.msra.mxu0 %v1616
    %1957 = vmatpush.bf16.msra.mxu0 %v1612
    %1958 = vmatpush.bf16.msra.mxu0 %v1608
    %1959 = vmatpush.bf16.msra.mxu0 %v1604
    %1960 = vmatpush.bf16.msra.mxu0 %v1600
    %1961 = vmatpush.bf16.msra.mxu0 %v1596
    %1962 = vmatmul.bf16.gmra.mxu0 %v1066
    %v1963 = vpop.f32.mrf.mxu0
    %v1964 = vadd.f32 %v1204, %v1963
    %v1965 = vpop.f32.mrf.mxu0
    %1966 = vdwg.mxu0
    %1967 = vmatpush.bf16.msra.mxu0 %v1656
    %1968 = vmatpush.bf16.msra.mxu0 %v1652
    %1969 = vmatpush.bf16.msra.mxu0 %v1648
    %1970 = vmatpush.bf16.msra.mxu0 %v1644
    %1971 = vmatpush.bf16.msra.mxu0 %v1640
    %1972 = vmatpush.bf16.msra.mxu0 %v1636
    %1973 = vmatpush.bf16.msra.mxu0 %v1632
    %1974 = vmatpush.bf16.msra.mxu0 %v1628
    %1975 = vmatmul.bf16.gmra.mxu0 %v1067
    %v1976 = vpop.f32.mrf.mxu0
    %v1977 = vadd.f32 %v1964, %v1976
    %v1978 = vpop.f32.mrf.mxu0
    %1979 = vdwg.mxu0
    %1980 = vmatpush.bf16.msra.mxu0 %v1688
    %1981 = vmatpush.bf16.msra.mxu0 %v1684
    %1982 = vmatpush.bf16.msra.mxu0 %v1680
    %1983 = vmatpush.bf16.msra.mxu0 %v1676
    %1984 = vmatpush.bf16.msra.mxu0 %v1672
    %1985 = vmatpush.bf16.msra.mxu0 %v1668
    %1986 = vmatpush.bf16.msra.mxu0 %v1664
    %1987 = vmatpush.bf16.msra.mxu0 %v1660
    %1988 = vmatmul.bf16.gmra.mxu0 %v1068
    %v1989 = vpop.f32.mrf.mxu0
    %v1990 = vadd.f32 %v1977, %v1989
    %v1991 = vpop.f32.mrf.mxu0
    %1992 = vdwg.mxu0
    %1993 = vmatpush.bf16.msra.mxu0 %v1720
    %1994 = vmatpush.bf16.msra.mxu0 %v1716
    %1995 = vmatpush.bf16.msra.mxu0 %v1712
    %1996 = vmatpush.bf16.msra.mxu0 %v1708
    %1997 = vmatpush.bf16.msra.mxu0 %v1704
    %1998 = vmatpush.bf16.msra.mxu0 %v1700
    %1999 = vmatpush.bf16.msra.mxu0 %v1696
    %2000 = vmatpush.bf16.msra.mxu0 %v1692
    %2001 = vmatmul.bf16.gmra.mxu0 %v1069
    %v2002 = vpop.f32.mrf.mxu0
    %v2003 = vadd.f32 %v1990, %v2002
    %v2004 = vpop.f32.mrf.mxu0
    %2005 = vdwg.mxu0
    %2006 = vmatpush.bf16.msra.mxu0 %v1625
    %2007 = vmatpush.bf16.msra.mxu0 %v1621
    %2008 = vmatpush.bf16.msra.mxu0 %v1617
    %2009 = vmatpush.bf16.msra.mxu0 %v1613
    %2010 = vmatpush.bf16.msra.mxu0 %v1609
    %2011 = vmatpush.bf16.msra.mxu0 %v1605
    %2012 = vmatpush.bf16.msra.mxu0 %v1601
    %2013 = vmatpush.bf16.msra.mxu0 %v1597
    %2014 = vmatmul.bf16.gmra.mxu0 %v1066
    %v2015 = vpop.f32.mrf.mxu0
    %v2016 = vadd.f32 %v1205, %v2015
    %v2017 = vpop.f32.mrf.mxu0
    %2018 = vdwg.mxu0
    %2019 = vmatpush.bf16.msra.mxu0 %v1657
    %2020 = vmatpush.bf16.msra.mxu0 %v1653
    %2021 = vmatpush.bf16.msra.mxu0 %v1649
    %2022 = vmatpush.bf16.msra.mxu0 %v1645
    %2023 = vmatpush.bf16.msra.mxu0 %v1641
    %2024 = vmatpush.bf16.msra.mxu0 %v1637
    %2025 = vmatpush.bf16.msra.mxu0 %v1633
    %2026 = vmatpush.bf16.msra.mxu0 %v1629
    %2027 = vmatmul.bf16.gmra.mxu0 %v1067
    %v2028 = vpop.f32.mrf.mxu0
    %v2029 = vadd.f32 %v2016, %v2028
    %v2030 = vpop.f32.mrf.mxu0
    %2031 = vdwg.mxu0
    %2032 = vmatpush.bf16.msra.mxu0 %v1689
    %2033 = vmatpush.bf16.msra.mxu0 %v1685
    %2034 = vmatpush.bf16.msra.mxu0 %v1681
    %2035 = vmatpush.bf16.msra.mxu0 %v1677
    %2036 = vmatpush.bf16.msra.mxu0 %v1673
    %2037 = vmatpush.bf16.msra.mxu0 %v1669
    %2038 = vmatpush.bf16.msra.mxu0 %v1665
    %2039 = vmatpush.bf16.msra.mxu0 %v1661
    %2040 = vmatmul.bf16.gmra.mxu0 %v1068
    %v2041 = vpop.f32.mrf.mxu0
    %v2042 = vadd.f32 %v2029, %v2041
    %v2043 = vpop.f32.mrf.mxu0
    %2044 = vdwg.mxu0
    %2045 = vmatpush.bf16.msra.mxu0 %v1721
    %2046 = vmatpush.bf16.msra.mxu0 %v1717
    %2047 = vmatpush.bf16.msra.mxu0 %v1713
    %2048 = vmatpush.bf16.msra.mxu0 %v1709
    %2049 = vmatpush.bf16.msra.mxu0 %v1705
    %2050 = vmatpush.bf16.msra.mxu0 %v1701
    %2051 = vmatpush.bf16.msra.mxu0 %v1697
    %2052 = vmatpush.bf16.msra.mxu0 %v1693
    %2053 = vmatmul.bf16.gmra.mxu0 %v1069
    %v2054 = vpop.f32.mrf.mxu0
    %v2055 = vadd.f32 %v2042, %v2054
    %v2056 = vpop.f32.mrf.mxu0
    %2057 = vdwg.mxu0
    %v2058 = vmax.f32 %v1899, 0.0
    %v2059 = vmax.f32 %v1951, 0.0
    %v2060 = vmax.f32 %v2003, 0.0
    %v2061 = vmax.f32 %v2055, 0.0
    %v2062 = vpack.c.bf16 %v2058, %v2058
    %v2063 = vpack.c.bf16 %v2059, %v2059
    %v2064 = vpack.c.bf16 %v2060, %v2060
    %v2065 = vpack.c.bf16 %v2061, %v2061
    %s2066 = scalar_lea.vmem [#allocation5], 2048
    %v2067 = vld [vmem:[%s2066] sm:$0xff]
    %v2068 = vld [vmem:[%s2066 + $0x8] sm:$0xff]
    %v2069 = vld [vmem:[%s2066 + $0x10] sm:$0xff]
    %v2070 = vld [vmem:[%s2066 + $0x18] sm:$0xff]
    %v2071 = vld [vmem:[%s2066 + $0x20] sm:$0xff]
    %v2072 = vld [vmem:[%s2066 + $0x28] sm:$0xff]
    %v2073 = vld [vmem:[%s2066 + $0x30] sm:$0xff]
    %v2074 = vld [vmem:[%s2066 + $0x38] sm:$0xff]
    %v2075 = vld [vmem:[%s2066 + $0x40] sm:$0xff]
    %v2076 = vld [vmem:[%s2066 + $0x48] sm:$0xff]
    %v2077 = vld [vmem:[%s2066 + $0x50] sm:$0xff]
    %v2078 = vld [vmem:[%s2066 + $0x58] sm:$0xff]
    %v2079 = vld [vmem:[%s2066 + $0x60] sm:$0xff]
    %v2080 = vld [vmem:[%s2066 + $0x68] sm:$0xff]
    %v2081 = vld [vmem:[%s2066 + $0x70] sm:$0xff]
    %v2082 = vld [vmem:[%s2066 + $0x78] sm:$0xff]
    %v2083 = vld [vmem:[%s2066 + $0x80] sm:$0xff]
    %v2084 = vld [vmem:[%s2066 + $0x88] sm:$0xff]
    %v2085 = vld [vmem:[%s2066 + $0x90] sm:$0xff]
    %v2086 = vld [vmem:[%s2066 + $0x98] sm:$0xff]
    %v2087 = vld [vmem:[%s2066 + $0xa0] sm:$0xff]
    %v2088 = vld [vmem:[%s2066 + $0xa8] sm:$0xff]
    %v2089 = vld [vmem:[%s2066 + $0xb0] sm:$0xff]
    %v2090 = vld [vmem:[%s2066 + $0xb8] sm:$0xff]
    %v2091 = vld [vmem:[%s2066 + $0xc0] sm:$0xff]
    %v2092 = vld [vmem:[%s2066 + $0xc8] sm:$0xff]
    %v2093 = vld [vmem:[%s2066 + $0xd0] sm:$0xff]
    %v2094 = vld [vmem:[%s2066 + $0xd8] sm:$0xff]
    %v2095 = vld [vmem:[%s2066 + $0xe0] sm:$0xff]
    %v2096 = vld [vmem:[%s2066 + $0xe8] sm:$0xff]
    %v2097 = vld [vmem:[%s2066 + $0xf0] sm:$0xff]
    %v2098 = vld [vmem:[%s2066 + $0xf8] sm:$0xff]
    %v2099 = vld [vmem:[%s2066 + $0x100] sm:$0xff]
    %v2100 = vld [vmem:[%s2066 + $0x108] sm:$0xff]
    %v2101 = vld [vmem:[%s2066 + $0x110] sm:$0xff]
    %v2102 = vld [vmem:[%s2066 + $0x118] sm:$0xff]
    %v2103 = vld [vmem:[%s2066 + $0x120] sm:$0xff]
    %v2104 = vld [vmem:[%s2066 + $0x128] sm:$0xff]
    %v2105 = vld [vmem:[%s2066 + $0x130] sm:$0xff]
    %v2106 = vld [vmem:[%s2066 + $0x138] sm:$0xff]
    %v2107 = vld [vmem:[%s2066 + $0x140] sm:$0xff]
    %v2108 = vld [vmem:[%s2066 + $0x148] sm:$0xff]
    %v2109 = vld [vmem:[%s2066 + $0x150] sm:$0xff]
    %v2110 = vld [vmem:[%s2066 + $0x158] sm:$0xff]
    %v2111 = vld [vmem:[%s2066 + $0x160] sm:$0xff]
    %v2112 = vld [vmem:[%s2066 + $0x168] sm:$0xff]
    %v2113 = vld [vmem:[%s2066 + $0x170] sm:$0xff]
    %v2114 = vld [vmem:[%s2066 + $0x178] sm:$0xff]
    %v2115 = vld [vmem:[%s2066 + $0x180] sm:$0xff]
    %v2116 = vld [vmem:[%s2066 + $0x188] sm:$0xff]
    %v2117 = vld [vmem:[%s2066 + $0x190] sm:$0xff]
    %v2118 = vld [vmem:[%s2066 + $0x198] sm:$0xff]
    %v2119 = vld [vmem:[%s2066 + $0x1a0] sm:$0xff]
    %v2120 = vld [vmem:[%s2066 + $0x1a8] sm:$0xff]
    %v2121 = vld [vmem:[%s2066 + $0x1b0] sm:$0xff]
    %v2122 = vld [vmem:[%s2066 + $0x1b8] sm:$0xff]
    %v2123 = vld [vmem:[%s2066 + $0x1c0] sm:$0xff]
    %v2124 = vld [vmem:[%s2066 + $0x1c8] sm:$0xff]
    %v2125 = vld [vmem:[%s2066 + $0x1d0] sm:$0xff]
    %v2126 = vld [vmem:[%s2066 + $0x1d8] sm:$0xff]
    %v2127 = vld [vmem:[%s2066 + $0x1e0] sm:$0xff]
    %v2128 = vld [vmem:[%s2066 + $0x1e8] sm:$0xff]
    %v2129 = vld [vmem:[%s2066 + $0x1f0] sm:$0xff]
    %v2130 = vld [vmem:[%s2066 + $0x1f8] sm:$0xff]
    %v2131 = vld [vmem:[%s2066 + $0x200] sm:$0xff]
    %v2132 = vld [vmem:[%s2066 + $0x208] sm:$0xff]
    %v2133 = vld [vmem:[%s2066 + $0x210] sm:$0xff]
    %v2134 = vld [vmem:[%s2066 + $0x218] sm:$0xff]
    %v2135 = vld [vmem:[%s2066 + $0x220] sm:$0xff]
    %v2136 = vld [vmem:[%s2066 + $0x228] sm:$0xff]
    %v2137 = vld [vmem:[%s2066 + $0x230] sm:$0xff]
    %v2138 = vld [vmem:[%s2066 + $0x238] sm:$0xff]
    %v2139 = vld [vmem:[%s2066 + $0x240] sm:$0xff]
    %v2140 = vld [vmem:[%s2066 + $0x248] sm:$0xff]
    %v2141 = vld [vmem:[%s2066 + $0x250] sm:$0xff]
    %v2142 = vld [vmem:[%s2066 + $0x258] sm:$0xff]
    %v2143 = vld [vmem:[%s2066 + $0x260] sm:$0xff]
    %v2144 = vld [vmem:[%s2066 + $0x268] sm:$0xff]
    %v2145 = vld [vmem:[%s2066 + $0x270] sm:$0xff]
    %v2146 = vld [vmem:[%s2066 + $0x278] sm:$0xff]
    %v2147 = vld [vmem:[%s2066 + $0x280] sm:$0xff]
    %v2148 = vld [vmem:[%s2066 + $0x288] sm:$0xff]
    %v2149 = vld [vmem:[%s2066 + $0x290] sm:$0xff]
    %v2150 = vld [vmem:[%s2066 + $0x298] sm:$0xff]
    %v2151 = vld [vmem:[%s2066 + $0x2a0] sm:$0xff]
    %v2152 = vld [vmem:[%s2066 + $0x2a8] sm:$0xff]
    %v2153 = vld [vmem:[%s2066 + $0x2b0] sm:$0xff]
    %v2154 = vld [vmem:[%s2066 + $0x2b8] sm:$0xff]
    %v2155 = vld [vmem:[%s2066 + $0x2c0] sm:$0xff]
    %v2156 = vld [vmem:[%s2066 + $0x2c8] sm:$0xff]
    %v2157 = vld [vmem:[%s2066 + $0x2d0] sm:$0xff]
    %v2158 = vld [vmem:[%s2066 + $0x2d8] sm:$0xff]
    %v2159 = vld [vmem:[%s2066 + $0x2e0] sm:$0xff]
    %v2160 = vld [vmem:[%s2066 + $0x2e8] sm:$0xff]
    %v2161 = vld [vmem:[%s2066 + $0x2f0] sm:$0xff]
    %v2162 = vld [vmem:[%s2066 + $0x2f8] sm:$0xff]
    %v2163 = vld [vmem:[%s2066 + $0x300] sm:$0xff]
    %v2164 = vld [vmem:[%s2066 + $0x308] sm:$0xff]
    %v2165 = vld [vmem:[%s2066 + $0x310] sm:$0xff]
    %v2166 = vld [vmem:[%s2066 + $0x318] sm:$0xff]
    %v2167 = vld [vmem:[%s2066 + $0x320] sm:$0xff]
    %v2168 = vld [vmem:[%s2066 + $0x328] sm:$0xff]
    %v2169 = vld [vmem:[%s2066 + $0x330] sm:$0xff]
    %v2170 = vld [vmem:[%s2066 + $0x338] sm:$0xff]
    %v2171 = vld [vmem:[%s2066 + $0x340] sm:$0xff]
    %v2172 = vld [vmem:[%s2066 + $0x348] sm:$0xff]
    %v2173 = vld [vmem:[%s2066 + $0x350] sm:$0xff]
    %v2174 = vld [vmem:[%s2066 + $0x358] sm:$0xff]
    %v2175 = vld [vmem:[%s2066 + $0x360] sm:$0xff]
    %v2176 = vld [vmem:[%s2066 + $0x368] sm:$0xff]
    %v2177 = vld [vmem:[%s2066 + $0x370] sm:$0xff]
    %v2178 = vld [vmem:[%s2066 + $0x378] sm:$0xff]
    %v2179 = vld [vmem:[%s2066 + $0x380] sm:$0xff]
    %v2180 = vld [vmem:[%s2066 + $0x388] sm:$0xff]
    %v2181 = vld [vmem:[%s2066 + $0x390] sm:$0xff]
    %v2182 = vld [vmem:[%s2066 + $0x398] sm:$0xff]
    %v2183 = vld [vmem:[%s2066 + $0x3a0] sm:$0xff]
    %v2184 = vld [vmem:[%s2066 + $0x3a8] sm:$0xff]
    %v2185 = vld [vmem:[%s2066 + $0x3b0] sm:$0xff]
    %v2186 = vld [vmem:[%s2066 + $0x3b8] sm:$0xff]
    %v2187 = vld [vmem:[%s2066 + $0x3c0] sm:$0xff]
    %v2188 = vld [vmem:[%s2066 + $0x3c8] sm:$0xff]
    %v2189 = vld [vmem:[%s2066 + $0x3d0] sm:$0xff]
    %v2190 = vld [vmem:[%s2066 + $0x3d8] sm:$0xff]
    %v2191 = vld [vmem:[%s2066 + $0x3e0] sm:$0xff]
    %v2192 = vld [vmem:[%s2066 + $0x3e8] sm:$0xff]
    %v2193 = vld [vmem:[%s2066 + $0x3f0] sm:$0xff]
    %v2194 = vld [vmem:[%s2066 + $0x3f8] sm:$0xff]
    %s2195 = scalar_lea.vmem [#allocation7], 8
    %v2196 = vld [vmem:[%s2195] sm:$0xf]
    %v2198 = vperm.slane %v2196, 0
    %v2199 = vperm.slane %v2196, 1
    %v2200 = vperm.slane %v2196, 2
    %v2201 = vperm.slane %v2196, 3
    %v2334 = vunpack.c.l.b16 %v2067
    %v2335 = vunpack.c.h.b16 %v2067
    %v2336 = vunpack.c.l.b16 %v2068
    %v2337 = vunpack.c.h.b16 %v2068
    %v2338 = vunpack.c.l.b16 %v2069
    %v2339 = vunpack.c.h.b16 %v2069
    %v2340 = vunpack.c.l.b16 %v2070
    %v2341 = vunpack.c.h.b16 %v2070
    %v2342 = vunpack.c.l.b16 %v2071
    %v2343 = vunpack.c.h.b16 %v2071
    %v2344 = vunpack.c.l.b16 %v2072
    %v2345 = vunpack.c.h.b16 %v2072
    %v2346 = vunpack.c.l.b16 %v2073
    %v2347 = vunpack.c.h.b16 %v2073
    %v2348 = vunpack.c.l.b16 %v2074
    %v2349 = vunpack.c.h.b16 %v2074
    %v2350 = vunpack.c.l.b16 %v2075
    %v2351 = vunpack.c.h.b16 %v2075
    %v2352 = vunpack.c.l.b16 %v2076
    %v2353 = vunpack.c.h.b16 %v2076
    %v2354 = vunpack.c.l.b16 %v2077
    %v2355 = vunpack.c.h.b16 %v2077
    %v2356 = vunpack.c.l.b16 %v2078
    %v2357 = vunpack.c.h.b16 %v2078
    %v2358 = vunpack.c.l.b16 %v2079
    %v2359 = vunpack.c.h.b16 %v2079
    %v2360 = vunpack.c.l.b16 %v2080
    %v2361 = vunpack.c.h.b16 %v2080
    %v2362 = vunpack.c.l.b16 %v2081
    %v2363 = vunpack.c.h.b16 %v2081
    %v2364 = vunpack.c.l.b16 %v2082
    %v2365 = vunpack.c.h.b16 %v2082
    %v2366 = vunpack.c.l.b16 %v2083
    %v2367 = vunpack.c.h.b16 %v2083
    %v2368 = vunpack.c.l.b16 %v2084
    %v2369 = vunpack.c.h.b16 %v2084
    %v2370 = vunpack.c.l.b16 %v2085
    %v2371 = vunpack.c.h.b16 %v2085
    %v2372 = vunpack.c.l.b16 %v2086
    %v2373 = vunpack.c.h.b16 %v2086
    %v2374 = vunpack.c.l.b16 %v2087
    %v2375 = vunpack.c.h.b16 %v2087
    %v2376 = vunpack.c.l.b16 %v2088
    %v2377 = vunpack.c.h.b16 %v2088
    %v2378 = vunpack.c.l.b16 %v2089
    %v2379 = vunpack.c.h.b16 %v2089
    %v2380 = vunpack.c.l.b16 %v2090
    %v2381 = vunpack.c.h.b16 %v2090
    %v2382 = vunpack.c.l.b16 %v2091
    %v2383 = vunpack.c.h.b16 %v2091
    %v2384 = vunpack.c.l.b16 %v2092
    %v2385 = vunpack.c.h.b16 %v2092
    %v2386 = vunpack.c.l.b16 %v2093
    %v2387 = vunpack.c.h.b16 %v2093
    %v2388 = vunpack.c.l.b16 %v2094
    %v2389 = vunpack.c.h.b16 %v2094
    %v2390 = vunpack.c.l.b16 %v2095
    %v2391 = vunpack.c.h.b16 %v2095
    %v2392 = vunpack.c.l.b16 %v2096
    %v2393 = vunpack.c.h.b16 %v2096
    %v2394 = vunpack.c.l.b16 %v2097
    %v2395 = vunpack.c.h.b16 %v2097
    %v2396 = vunpack.c.l.b16 %v2098
    %v2397 = vunpack.c.h.b16 %v2098
    %v2398 = vunpack.c.l.b16 %v2099
    %v2399 = vunpack.c.h.b16 %v2099
    %v2400 = vunpack.c.l.b16 %v2100
    %v2401 = vunpack.c.h.b16 %v2100
    %v2402 = vunpack.c.l.b16 %v2101
    %v2403 = vunpack.c.h.b16 %v2101
    %v2404 = vunpack.c.l.b16 %v2102
    %v2405 = vunpack.c.h.b16 %v2102
    %v2406 = vunpack.c.l.b16 %v2103
    %v2407 = vunpack.c.h.b16 %v2103
    %v2408 = vunpack.c.l.b16 %v2104
    %v2409 = vunpack.c.h.b16 %v2104
    %v2410 = vunpack.c.l.b16 %v2105
    %v2411 = vunpack.c.h.b16 %v2105
    %v2412 = vunpack.c.l.b16 %v2106
    %v2413 = vunpack.c.h.b16 %v2106
    %v2414 = vunpack.c.l.b16 %v2107
    %v2415 = vunpack.c.h.b16 %v2107
    %v2416 = vunpack.c.l.b16 %v2108
    %v2417 = vunpack.c.h.b16 %v2108
    %v2418 = vunpack.c.l.b16 %v2109
    %v2419 = vunpack.c.h.b16 %v2109
    %v2420 = vunpack.c.l.b16 %v2110
    %v2421 = vunpack.c.h.b16 %v2110
    %v2422 = vunpack.c.l.b16 %v2111
    %v2423 = vunpack.c.h.b16 %v2111
    %v2424 = vunpack.c.l.b16 %v2112
    %v2425 = vunpack.c.h.b16 %v2112
    %v2426 = vunpack.c.l.b16 %v2113
    %v2427 = vunpack.c.h.b16 %v2113
    %v2428 = vunpack.c.l.b16 %v2114
    %v2429 = vunpack.c.h.b16 %v2114
    %v2430 = vunpack.c.l.b16 %v2115
    %v2431 = vunpack.c.h.b16 %v2115
    %v2432 = vunpack.c.l.b16 %v2116
    %v2433 = vunpack.c.h.b16 %v2116
    %v2434 = vunpack.c.l.b16 %v2117
    %v2435 = vunpack.c.h.b16 %v2117
    %v2436 = vunpack.c.l.b16 %v2118
    %v2437 = vunpack.c.h.b16 %v2118
    %v2438 = vunpack.c.l.b16 %v2119
    %v2439 = vunpack.c.h.b16 %v2119
    %v2440 = vunpack.c.l.b16 %v2120
    %v2441 = vunpack.c.h.b16 %v2120
    %v2442 = vunpack.c.l.b16 %v2121
    %v2443 = vunpack.c.h.b16 %v2121
    %v2444 = vunpack.c.l.b16 %v2122
    %v2445 = vunpack.c.h.b16 %v2122
    %v2446 = vunpack.c.l.b16 %v2123
    %v2447 = vunpack.c.h.b16 %v2123
    %v2448 = vunpack.c.l.b16 %v2124
    %v2449 = vunpack.c.h.b16 %v2124
    %v2450 = vunpack.c.l.b16 %v2125
    %v2451 = vunpack.c.h.b16 %v2125
    %v2452 = vunpack.c.l.b16 %v2126
    %v2453 = vunpack.c.h.b16 %v2126
    %v2454 = vunpack.c.l.b16 %v2127
    %v2455 = vunpack.c.h.b16 %v2127
    %v2456 = vunpack.c.l.b16 %v2128
    %v2457 = vunpack.c.h.b16 %v2128
    %v2458 = vunpack.c.l.b16 %v2129
    %v2459 = vunpack.c.h.b16 %v2129
    %v2460 = vunpack.c.l.b16 %v2130
    %v2461 = vunpack.c.h.b16 %v2130
    %v2462 = vunpack.c.l.b16 %v2131
    %v2463 = vunpack.c.h.b16 %v2131
    %v2464 = vunpack.c.l.b16 %v2132
    %v2465 = vunpack.c.h.b16 %v2132
    %v2466 = vunpack.c.l.b16 %v2133
    %v2467 = vunpack.c.h.b16 %v2133
    %v2468 = vunpack.c.l.b16 %v2134
    %v2469 = vunpack.c.h.b16 %v2134
    %v2470 = vunpack.c.l.b16 %v2135
    %v2471 = vunpack.c.h.b16 %v2135
    %v2472 = vunpack.c.l.b16 %v2136
    %v2473 = vunpack.c.h.b16 %v2136
    %v2474 = vunpack.c.l.b16 %v2137
    %v2475 = vunpack.c.h.b16 %v2137
    %v2476 = vunpack.c.l.b16 %v2138
    %v2477 = vunpack.c.h.b16 %v2138
    %v2478 = vunpack.c.l.b16 %v2139
    %v2479 = vunpack.c.h.b16 %v2139
    %v2480 = vunpack.c.l.b16 %v2140
    %v2481 = vunpack.c.h.b16 %v2140
    %v2482 = vunpack.c.l.b16 %v2141
    %v2483 = vunpack.c.h.b16 %v2141
    %v2484 = vunpack.c.l.b16 %v2142
    %v2485 = vunpack.c.h.b16 %v2142
    %v2486 = vunpack.c.l.b16 %v2143
    %v2487 = vunpack.c.h.b16 %v2143
    %v2488 = vunpack.c.l.b16 %v2144
    %v2489 = vunpack.c.h.b16 %v2144
    %v2490 = vunpack.c.l.b16 %v2145
    %v2491 = vunpack.c.h.b16 %v2145
    %v2492 = vunpack.c.l.b16 %v2146
    %v2493 = vunpack.c.h.b16 %v2146
    %v2494 = vunpack.c.l.b16 %v2147
    %v2495 = vunpack.c.h.b16 %v2147
    %v2496 = vunpack.c.l.b16 %v2148
    %v2497 = vunpack.c.h.b16 %v2148
    %v2498 = vunpack.c.l.b16 %v2149
    %v2499 = vunpack.c.h.b16 %v2149
    %v2500 = vunpack.c.l.b16 %v2150
    %v2501 = vunpack.c.h.b16 %v2150
    %v2502 = vunpack.c.l.b16 %v2151
    %v2503 = vunpack.c.h.b16 %v2151
    %v2504 = vunpack.c.l.b16 %v2152
    %v2505 = vunpack.c.h.b16 %v2152
    %v2506 = vunpack.c.l.b16 %v2153
    %v2507 = vunpack.c.h.b16 %v2153
    %v2508 = vunpack.c.l.b16 %v2154
    %v2509 = vunpack.c.h.b16 %v2154
    %v2510 = vunpack.c.l.b16 %v2155
    %v2511 = vunpack.c.h.b16 %v2155
    %v2512 = vunpack.c.l.b16 %v2156
    %v2513 = vunpack.c.h.b16 %v2156
    %v2514 = vunpack.c.l.b16 %v2157
    %v2515 = vunpack.c.h.b16 %v2157
    %v2516 = vunpack.c.l.b16 %v2158
    %v2517 = vunpack.c.h.b16 %v2158
    %v2518 = vunpack.c.l.b16 %v2159
    %v2519 = vunpack.c.h.b16 %v2159
    %v2520 = vunpack.c.l.b16 %v2160
    %v2521 = vunpack.c.h.b16 %v2160
    %v2522 = vunpack.c.l.b16 %v2161
    %v2523 = vunpack.c.h.b16 %v2161
    %v2524 = vunpack.c.l.b16 %v2162
    %v2525 = vunpack.c.h.b16 %v2162
    %v2526 = vunpack.c.l.b16 %v2163
    %v2527 = vunpack.c.h.b16 %v2163
    %v2528 = vunpack.c.l.b16 %v2164
    %v2529 = vunpack.c.h.b16 %v2164
    %v2530 = vunpack.c.l.b16 %v2165
    %v2531 = vunpack.c.h.b16 %v2165
    %v2532 = vunpack.c.l.b16 %v2166
    %v2533 = vunpack.c.h.b16 %v2166
    %v2534 = vunpack.c.l.b16 %v2167
    %v2535 = vunpack.c.h.b16 %v2167
    %v2536 = vunpack.c.l.b16 %v2168
    %v2537 = vunpack.c.h.b16 %v2168
    %v2538 = vunpack.c.l.b16 %v2169
    %v2539 = vunpack.c.h.b16 %v2169
    %v2540 = vunpack.c.l.b16 %v2170
    %v2541 = vunpack.c.h.b16 %v2170
    %v2542 = vunpack.c.l.b16 %v2171
    %v2543 = vunpack.c.h.b16 %v2171
    %v2544 = vunpack.c.l.b16 %v2172
    %v2545 = vunpack.c.h.b16 %v2172
    %v2546 = vunpack.c.l.b16 %v2173
    %v2547 = vunpack.c.h.b16 %v2173
    %v2548 = vunpack.c.l.b16 %v2174
    %v2549 = vunpack.c.h.b16 %v2174
    %v2550 = vunpack.c.l.b16 %v2175
    %v2551 = vunpack.c.h.b16 %v2175
    %v2552 = vunpack.c.l.b16 %v2176
    %v2553 = vunpack.c.h.b16 %v2176
    %v2554 = vunpack.c.l.b16 %v2177
    %v2555 = vunpack.c.h.b16 %v2177
    %v2556 = vunpack.c.l.b16 %v2178
    %v2557 = vunpack.c.h.b16 %v2178
    %v2558 = vunpack.c.l.b16 %v2179
    %v2559 = vunpack.c.h.b16 %v2179
    %v2560 = vunpack.c.l.b16 %v2180
    %v2561 = vunpack.c.h.b16 %v2180
    %v2562 = vunpack.c.l.b16 %v2181
    %v2563 = vunpack.c.h.b16 %v2181
    %v2564 = vunpack.c.l.b16 %v2182
    %v2565 = vunpack.c.h.b16 %v2182
    %v2566 = vunpack.c.l.b16 %v2183
    %v2567 = vunpack.c.h.b16 %v2183
    %v2568 = vunpack.c.l.b16 %v2184
    %v2569 = vunpack.c.h.b16 %v2184
    %v2570 = vunpack.c.l.b16 %v2185
    %v2571 = vunpack.c.h.b16 %v2185
    %v2572 = vunpack.c.l.b16 %v2186
    %v2573 = vunpack.c.h.b16 %v2186
    %v2574 = vunpack.c.l.b16 %v2187
    %v2575 = vunpack.c.h.b16 %v2187
    %v2576 = vunpack.c.l.b16 %v2188
    %v2577 = vunpack.c.h.b16 %v2188
    %v2578 = vunpack.c.l.b16 %v2189
    %v2579 = vunpack.c.h.b16 %v2189
    %v2580 = vunpack.c.l.b16 %v2190
    %v2581 = vunpack.c.h.b16 %v2190
    %v2582 = vunpack.c.l.b16 %v2191
    %v2583 = vunpack.c.h.b16 %v2191
    %v2584 = vunpack.c.l.b16 %v2192
    %v2585 = vunpack.c.h.b16 %v2192
    %v2586 = vunpack.c.l.b16 %v2193
    %v2587 = vunpack.c.h.b16 %v2193
    %v2588 = vunpack.c.l.b16 %v2194
    %v2589 = vunpack.c.h.b16 %v2194
    %v2590 = vpack.c.b16 %v2338, %v2334
    %v2591 = vpack.c.b16 %v2339, %v2335
    %v2592 = vpack.c.b16 %v2340, %v2336
    %v2593 = vpack.c.b16 %v2341, %v2337
    %v2594 = vpack.c.b16 %v2346, %v2342
    %v2595 = vpack.c.b16 %v2347, %v2343
    %v2596 = vpack.c.b16 %v2348, %v2344
    %v2597 = vpack.c.b16 %v2349, %v2345
    %v2598 = vpack.c.b16 %v2354, %v2350
    %v2599 = vpack.c.b16 %v2355, %v2351
    %v2600 = vpack.c.b16 %v2356, %v2352
    %v2601 = vpack.c.b16 %v2357, %v2353
    %v2602 = vpack.c.b16 %v2362, %v2358
    %v2603 = vpack.c.b16 %v2363, %v2359
    %v2604 = vpack.c.b16 %v2364, %v2360
    %v2605 = vpack.c.b16 %v2365, %v2361
    %v2606 = vpack.c.b16 %v2370, %v2366
    %v2607 = vpack.c.b16 %v2371, %v2367
    %v2608 = vpack.c.b16 %v2372, %v2368
    %v2609 = vpack.c.b16 %v2373, %v2369
    %v2610 = vpack.c.b16 %v2378, %v2374
    %v2611 = vpack.c.b16 %v2379, %v2375
    %v2612 = vpack.c.b16 %v2380, %v2376
    %v2613 = vpack.c.b16 %v2381, %v2377
    %v2614 = vpack.c.b16 %v2386, %v2382
    %v2615 = vpack.c.b16 %v2387, %v2383
    %v2616 = vpack.c.b16 %v2388, %v2384
    %v2617 = vpack.c.b16 %v2389, %v2385
    %v2618 = vpack.c.b16 %v2394, %v2390
    %v2619 = vpack.c.b16 %v2395, %v2391
    %v2620 = vpack.c.b16 %v2396, %v2392
    %v2621 = vpack.c.b16 %v2397, %v2393
    %v2622 = vpack.c.b16 %v2402, %v2398
    %v2623 = vpack.c.b16 %v2403, %v2399
    %v2624 = vpack.c.b16 %v2404, %v2400
    %v2625 = vpack.c.b16 %v2405, %v2401
    %v2626 = vpack.c.b16 %v2410, %v2406
    %v2627 = vpack.c.b16 %v2411, %v2407
    %v2628 = vpack.c.b16 %v2412, %v2408
    %v2629 = vpack.c.b16 %v2413, %v2409
    %v2630 = vpack.c.b16 %v2418, %v2414
    %v2631 = vpack.c.b16 %v2419, %v2415
    %v2632 = vpack.c.b16 %v2420, %v2416
    %v2633 = vpack.c.b16 %v2421, %v2417
    %v2634 = vpack.c.b16 %v2426, %v2422
    %v2635 = vpack.c.b16 %v2427, %v2423
    %v2636 = vpack.c.b16 %v2428, %v2424
    %v2637 = vpack.c.b16 %v2429, %v2425
    %v2638 = vpack.c.b16 %v2434, %v2430
    %v2639 = vpack.c.b16 %v2435, %v2431
    %v2640 = vpack.c.b16 %v2436, %v2432
    %v2641 = vpack.c.b16 %v2437, %v2433
    %v2642 = vpack.c.b16 %v2442, %v2438
    %v2643 = vpack.c.b16 %v2443, %v2439
    %v2644 = vpack.c.b16 %v2444, %v2440
    %v2645 = vpack.c.b16 %v2445, %v2441
    %v2646 = vpack.c.b16 %v2450, %v2446
    %v2647 = vpack.c.b16 %v2451, %v2447
    %v2648 = vpack.c.b16 %v2452, %v2448
    %v2649 = vpack.c.b16 %v2453, %v2449
    %v2650 = vpack.c.b16 %v2458, %v2454
    %v2651 = vpack.c.b16 %v2459, %v2455
    %v2652 = vpack.c.b16 %v2460, %v2456
    %v2653 = vpack.c.b16 %v2461, %v2457
    %v2654 = vpack.c.b16 %v2466, %v2462
    %v2655 = vpack.c.b16 %v2467, %v2463
    %v2656 = vpack.c.b16 %v2468, %v2464
    %v2657 = vpack.c.b16 %v2469, %v2465
    %v2658 = vpack.c.b16 %v2474, %v2470
    %v2659 = vpack.c.b16 %v2475, %v2471
    %v2660 = vpack.c.b16 %v2476, %v2472
    %v2661 = vpack.c.b16 %v2477, %v2473
    %v2662 = vpack.c.b16 %v2482, %v2478
    %v2663 = vpack.c.b16 %v2483, %v2479
    %v2664 = vpack.c.b16 %v2484, %v2480
    %v2665 = vpack.c.b16 %v2485, %v2481
    %v2666 = vpack.c.b16 %v2490, %v2486
    %v2667 = vpack.c.b16 %v2491, %v2487
    %v2668 = vpack.c.b16 %v2492, %v2488
    %v2669 = vpack.c.b16 %v2493, %v2489
    %v2670 = vpack.c.b16 %v2498, %v2494
    %v2671 = vpack.c.b16 %v2499, %v2495
    %v2672 = vpack.c.b16 %v2500, %v2496
    %v2673 = vpack.c.b16 %v2501, %v2497
    %v2674 = vpack.c.b16 %v2506, %v2502
    %v2675 = vpack.c.b16 %v2507, %v2503
    %v2676 = vpack.c.b16 %v2508, %v2504
    %v2677 = vpack.c.b16 %v2509, %v2505
    %v2678 = vpack.c.b16 %v2514, %v2510
    %v2679 = vpack.c.b16 %v2515, %v2511
    %v2680 = vpack.c.b16 %v2516, %v2512
    %v2681 = vpack.c.b16 %v2517, %v2513
    %v2682 = vpack.c.b16 %v2522, %v2518
    %v2683 = vpack.c.b16 %v2523, %v2519
    %v2684 = vpack.c.b16 %v2524, %v2520
    %v2685 = vpack.c.b16 %v2525, %v2521
    %v2686 = vpack.c.b16 %v2530, %v2526
    %v2687 = vpack.c.b16 %v2531, %v2527
    %v2688 = vpack.c.b16 %v2532, %v2528
    %v2689 = vpack.c.b16 %v2533, %v2529
    %v2690 = vpack.c.b16 %v2538, %v2534
    %v2691 = vpack.c.b16 %v2539, %v2535
    %v2692 = vpack.c.b16 %v2540, %v2536
    %v2693 = vpack.c.b16 %v2541, %v2537
    %v2694 = vpack.c.b16 %v2546, %v2542
    %v2695 = vpack.c.b16 %v2547, %v2543
    %v2696 = vpack.c.b16 %v2548, %v2544
    %v2697 = vpack.c.b16 %v2549, %v2545
    %v2698 = vpack.c.b16 %v2554, %v2550
    %v2699 = vpack.c.b16 %v2555, %v2551
    %v2700 = vpack.c.b16 %v2556, %v2552
    %v2701 = vpack.c.b16 %v2557, %v2553
    %v2702 = vpack.c.b16 %v2562, %v2558
    %v2703 = vpack.c.b16 %v2563, %v2559
    %v2704 = vpack.c.b16 %v2564, %v2560
    %v2705 = vpack.c.b16 %v2565, %v2561
    %v2706 = vpack.c.b16 %v2570, %v2566
    %v2707 = vpack.c.b16 %v2571, %v2567
    %v2708 = vpack.c.b16 %v2572, %v2568
    %v2709 = vpack.c.b16 %v2573, %v2569
    %v2710 = vpack.c.b16 %v2578, %v2574
    %v2711 = vpack.c.b16 %v2579, %v2575
    %v2712 = vpack.c.b16 %v2580, %v2576
    %v2713 = vpack.c.b16 %v2581, %v2577
    %v2714 = vpack.c.b16 %v2586, %v2582
    %v2715 = vpack.c.b16 %v2587, %v2583
    %v2716 = vpack.c.b16 %v2588, %v2584
    %v2717 = vpack.c.b16 %v2589, %v2585
    %2846 = vmatpush.bf16.msra.mxu0 %v2618
    %2847 = vmatpush.bf16.msra.mxu0 %v2614
    %2848 = vmatpush.bf16.msra.mxu0 %v2610
    %2849 = vmatpush.bf16.msra.mxu0 %v2606
    %2850 = vmatpush.bf16.msra.mxu0 %v2602
    %2851 = vmatpush.bf16.msra.mxu0 %v2598
    %2852 = vmatpush.bf16.msra.mxu0 %v2594
    %2853 = vmatpush.bf16.msra.mxu0 %v2590
    %2854 = vmatmul.bf16.gmra.mxu0 %v2062
    %v2855 = vpop.f32.mrf.mxu0
    %v2856 = vadd.f32 %v2198, %v2855
    %v2857 = vpop.f32.mrf.mxu0
    %2858 = vdwg.mxu0
    %2859 = vmatpush.bf16.msra.mxu0 %v2650
    %2860 = vmatpush.bf16.msra.mxu0 %v2646
    %2861 = vmatpush.bf16.msra.mxu0 %v2642
    %2862 = vmatpush.bf16.msra.mxu0 %v2638
    %2863 = vmatpush.bf16.msra.mxu0 %v2634
    %2864 = vmatpush.bf16.msra.mxu0 %v2630
    %2865 = vmatpush.bf16.msra.mxu0 %v2626
    %2866 = vmatpush.bf16.msra.mxu0 %v2622
    %2867 = vmatmul.bf16.gmra.mxu0 %v2063
    %v2868 = vpop.f32.mrf.mxu0
    %v2869 = vadd.f32 %v2856, %v2868
    %v2870 = vpop.f32.mrf.mxu0
    %2871 = vdwg.mxu0
    %2872 = vmatpush.bf16.msra.mxu0 %v2682
    %2873 = vmatpush.bf16.msra.mxu0 %v2678
    %2874 = vmatpush.bf16.msra.mxu0 %v2674
    %2875 = vmatpush.bf16.msra.mxu0 %v2670
    %2876 = vmatpush.bf16.msra.mxu0 %v2666
    %2877 = vmatpush.bf16.msra.mxu0 %v2662
    %2878 = vmatpush.bf16.msra.mxu0 %v2658
    %2879 = vmatpush.bf16.msra.mxu0 %v2654
    %2880 = vmatmul.bf16.gmra.mxu0 %v2064
    %v2881 = vpop.f32.mrf.mxu0
    %v2882 = vadd.f32 %v2869, %v2881
    %v2883 = vpop.f32.mrf.mxu0
    %2884 = vdwg.mxu0
    %2885 = vmatpush.bf16.msra.mxu0 %v2714
    %2886 = vmatpush.bf16.msra.mxu0 %v2710
    %2887 = vmatpush.bf16.msra.mxu0 %v2706
    %2888 = vmatpush.bf16.msra.mxu0 %v2702
    %2889 = vmatpush.bf16.msra.mxu0 %v2698
    %2890 = vmatpush.bf16.msra.mxu0 %v2694
    %2891 = vmatpush.bf16.msra.mxu0 %v2690
    %2892 = vmatpush.bf16.msra.mxu0 %v2686
    %2893 = vmatmul.bf16.gmra.mxu0 %v2065
    %v2894 = vpop.f32.mrf.mxu0
    %v2895 = vadd.f32 %v2882, %v2894
    %v2896 = vpop.f32.mrf.mxu0
    %2897 = vdwg.mxu0
    %2898 = vmatpush.bf16.msra.mxu0 %v2619
    %2899 = vmatpush.bf16.msra.mxu0 %v2615
    %2900 = vmatpush.bf16.msra.mxu0 %v2611
    %2901 = vmatpush.bf16.msra.mxu0 %v2607
    %2902 = vmatpush.bf16.msra.mxu0 %v2603
    %2903 = vmatpush.bf16.msra.mxu0 %v2599
    %2904 = vmatpush.bf16.msra.mxu0 %v2595
    %2905 = vmatpush.bf16.msra.mxu0 %v2591
    %2906 = vmatmul.bf16.gmra.mxu0 %v2062
    %v2907 = vpop.f32.mrf.mxu0
    %v2908 = vadd.f32 %v2199, %v2907
    %v2909 = vpop.f32.mrf.mxu0
    %2910 = vdwg.mxu0
    %2911 = vmatpush.bf16.msra.mxu0 %v2651
    %2912 = vmatpush.bf16.msra.mxu0 %v2647
    %2913 = vmatpush.bf16.msra.mxu0 %v2643
    %2914 = vmatpush.bf16.msra.mxu0 %v2639
    %2915 = vmatpush.bf16.msra.mxu0 %v2635
    %2916 = vmatpush.bf16.msra.mxu0 %v2631
    %2917 = vmatpush.bf16.msra.mxu0 %v2627
    %2918 = vmatpush.bf16.msra.mxu0 %v2623
    %2919 = vmatmul.bf16.gmra.mxu0 %v2063
    %v2920 = vpop.f32.mrf.mxu0
    %v2921 = vadd.f32 %v2908, %v2920
    %v2922 = vpop.f32.mrf.mxu0
    %2923 = vdwg.mxu0
    %2924 = vmatpush.bf16.msra.mxu0 %v2683
    %2925 = vmatpush.bf16.msra.mxu0 %v2679
    %2926 = vmatpush.bf16.msra.mxu0 %v2675
    %2927 = vmatpush.bf16.msra.mxu0 %v2671
    %2928 = vmatpush.bf16.msra.mxu0 %v2667
    %2929 = vmatpush.bf16.msra.mxu0 %v2663
    %2930 = vmatpush.bf16.msra.mxu0 %v2659
    %2931 = vmatpush.bf16.msra.mxu0 %v2655
    %2932 = vmatmul.bf16.gmra.mxu0 %v2064
    %v2933 = vpop.f32.mrf.mxu0
    %v2934 = vadd.f32 %v2921, %v2933
    %v2935 = vpop.f32.mrf.mxu0
    %2936 = vdwg.mxu0
    %2937 = vmatpush.bf16.msra.mxu0 %v2715
    %2938 = vmatpush.bf16.msra.mxu0 %v2711
    %2939 = vmatpush.bf16.msra.mxu0 %v2707
    %2940 = vmatpush.bf16.msra.mxu0 %v2703
    %2941 = vmatpush.bf16.msra.mxu0 %v2699
    %2942 = vmatpush.bf16.msra.mxu0 %v2695
    %2943 = vmatpush.bf16.msra.mxu0 %v2691
    %2944 = vmatpush.bf16.msra.mxu0 %v2687
    %2945 = vmatmul.bf16.gmra.mxu0 %v2065
    %v2946 = vpop.f32.mrf.mxu0
    %v2947 = vadd.f32 %v2934, %v2946
    %v2948 = vpop.f32.mrf.mxu0
    %2949 = vdwg.mxu0
    %2950 = vmatpush.bf16.msra.mxu0 %v2620
    %2951 = vmatpush.bf16.msra.mxu0 %v2616
    %2952 = vmatpush.bf16.msra.mxu0 %v2612
    %2953 = vmatpush.bf16.msra.mxu0 %v2608
    %2954 = vmatpush.bf16.msra.mxu0 %v2604
    %2955 = vmatpush.bf16.msra.mxu0 %v2600
    %2956 = vmatpush.bf16.msra.mxu0 %v2596
    %2957 = vmatpush.bf16.msra.mxu0 %v2592
    %2958 = vmatmul.bf16.gmra.mxu0 %v2062
    %v2959 = vpop.f32.mrf.mxu0
    %v2960 = vadd.f32 %v2200, %v2959
    %v2961 = vpop.f32.mrf.mxu0
    %2962 = vdwg.mxu0
    %2963 = vmatpush.bf16.msra.mxu0 %v2652
    %2964 = vmatpush.bf16.msra.mxu0 %v2648
    %2965 = vmatpush.bf16.msra.mxu0 %v2644
    %2966 = vmatpush.bf16.msra.mxu0 %v2640
    %2967 = vmatpush.bf16.msra.mxu0 %v2636
    %2968 = vmatpush.bf16.msra.mxu0 %v2632
    %2969 = vmatpush.bf16.msra.mxu0 %v2628
    %2970 = vmatpush.bf16.msra.mxu0 %v2624
    %2971 = vmatmul.bf16.gmra.mxu0 %v2063
    %v2972 = vpop.f32.mrf.mxu0
    %v2973 = vadd.f32 %v2960, %v2972
    %v2974 = vpop.f32.mrf.mxu0
    %2975 = vdwg.mxu0
    %2976 = vmatpush.bf16.msra.mxu0 %v2684
    %2977 = vmatpush.bf16.msra.mxu0 %v2680
    %2978 = vmatpush.bf16.msra.mxu0 %v2676
    %2979 = vmatpush.bf16.msra.mxu0 %v2672
    %2980 = vmatpush.bf16.msra.mxu0 %v2668
    %2981 = vmatpush.bf16.msra.mxu0 %v2664
    %2982 = vmatpush.bf16.msra.mxu0 %v2660
    %2983 = vmatpush.bf16.msra.mxu0 %v2656
    %2984 = vmatmul.bf16.gmra.mxu0 %v2064
    %v2985 = vpop.f32.mrf.mxu0
    %v2986 = vadd.f32 %v2973, %v2985
    %v2987 = vpop.f32.mrf.mxu0
    %2988 = vdwg.mxu0
    %2989 = vmatpush.bf16.msra.mxu0 %v2716
    %2990 = vmatpush.bf16.msra.mxu0 %v2712
    %2991 = vmatpush.bf16.msra.mxu0 %v2708
    %2992 = vmatpush.bf16.msra.mxu0 %v2704
    %2993 = vmatpush.bf16.msra.mxu0 %v2700
    %2994 = vmatpush.bf16.msra.mxu0 %v2696
    %2995 = vmatpush.bf16.msra.mxu0 %v2692
    %2996 = vmatpush.bf16.msra.mxu0 %v2688
    %2997 = vmatmul.bf16.gmra.mxu0 %v2065
    %v2998 = vpop.f32.mrf.mxu0
    %v2999 = vadd.f32 %v2986, %v2998
    %v3000 = vpop.f32.mrf.mxu0
    %3001 = vdwg.mxu0
    %3002 = vmatpush.bf16.msra.mxu0 %v2621
    %3003 = vmatpush.bf16.msra.mxu0 %v2617
    %3004 = vmatpush.bf16.msra.mxu0 %v2613
    %3005 = vmatpush.bf16.msra.mxu0 %v2609
    %3006 = vmatpush.bf16.msra.mxu0 %v2605
    %3007 = vmatpush.bf16.msra.mxu0 %v2601
    %3008 = vmatpush.bf16.msra.mxu0 %v2597
    %3009 = vmatpush.bf16.msra.mxu0 %v2593
    %3010 = vmatmul.bf16.gmra.mxu0 %v2062
    %v3011 = vpop.f32.mrf.mxu0
    %v3012 = vadd.f32 %v2201, %v3011
    %v3013 = vpop.f32.mrf.mxu0
    %3014 = vdwg.mxu0
    %3015 = vmatpush.bf16.msra.mxu0 %v2653
    %3016 = vmatpush.bf16.msra.mxu0 %v2649
    %3017 = vmatpush.bf16.msra.mxu0 %v2645
    %3018 = vmatpush.bf16.msra.mxu0 %v2641
    %3019 = vmatpush.bf16.msra.mxu0 %v2637
    %3020 = vmatpush.bf16.msra.mxu0 %v2633
    %3021 = vmatpush.bf16.msra.mxu0 %v2629
    %3022 = vmatpush.bf16.msra.mxu0 %v2625
    %3023 = vmatmul.bf16.gmra.mxu0 %v2063
    %v3024 = vpop.f32.mrf.mxu0
    %v3025 = vadd.f32 %v3012, %v3024
    %v3026 = vpop.f32.mrf.mxu0
    %3027 = vdwg.mxu0
    %3028 = vmatpush.bf16.msra.mxu0 %v2685
    %3029 = vmatpush.bf16.msra.mxu0 %v2681
    %3030 = vmatpush.bf16.msra.mxu0 %v2677
    %3031 = vmatpush.bf16.msra.mxu0 %v2673
    %3032 = vmatpush.bf16.msra.mxu0 %v2669
    %3033 = vmatpush.bf16.msra.mxu0 %v2665
    %3034 = vmatpush.bf16.msra.mxu0 %v2661
    %3035 = vmatpush.bf16.msra.mxu0 %v2657
    %3036 = vmatmul.bf16.gmra.mxu0 %v2064
    %v3037 = vpop.f32.mrf.mxu0
    %v3038 = vadd.f32 %v3025, %v3037
    %v3039 = vpop.f32.mrf.mxu0
    %3040 = vdwg.mxu0
    %3041 = vmatpush.bf16.msra.mxu0 %v2717
    %3042 = vmatpush.bf16.msra.mxu0 %v2713
    %3043 = vmatpush.bf16.msra.mxu0 %v2709
    %3044 = vmatpush.bf16.msra.mxu0 %v2705
    %3045 = vmatpush.bf16.msra.mxu0 %v2701
    %3046 = vmatpush.bf16.msra.mxu0 %v2697
    %3047 = vmatpush.bf16.msra.mxu0 %v2693
    %3048 = vmatpush.bf16.msra.mxu0 %v2689
    %3049 = vmatmul.bf16.gmra.mxu0 %v2065
    %v3050 = vpop.f32.mrf.mxu0
    %v3051 = vadd.f32 %v3038, %v3050
    %v3052 = vpop.f32.mrf.mxu0
    %3053 = vdwg.mxu0
    %3054 = vst [vmem:[#allocation8] sm:$0xff] %v2895
    %3055 = vst [vmem:[#allocation8 + $0x8] sm:$0xff] %v2947
    %3056 = vst [vmem:[#allocation8 + $0x10] sm:$0xff] %v2999
    %3057 = vst [vmem:[#allocation8 + $0x18] sm:$0xff] %v3051
    // Predicated region
    $region26: #{tpu_custom_call.1} parent=1 // pred_check
      _
    $region27: #{tpu_custom_call.1} parent=1 // pred_check_branch
      %3059 = sbr.rel (0) target = $region29
    $region28: #{tpu_custom_call.1} parent=1 // pred_region
      %3061 = vsyncadd [#allocation4], 0
      %s3063 = sshll.u32 [#allocation8], 4
      %s3064 = int_to_ptr.vmem [resolvable:$true] %s3063
      %s3065 = sshll.u32 %s3, 4
      %s3066 = int_to_ptr.hbm [resolvable:$true] %s3065
      %3068 = dma.vmem_to_hbm [thread:$0]  %s3064, 512, %s3066, [#allocation4]
    $region29: #{tpu_custom_call.1} parent=1 // pred_fallthru
      _
    // Predicated region
    $region30: #{tpu_custom_call.1} parent=1 // pred_check
      _
    $region31: #{tpu_custom_call.1} parent=1 // pred_check_branch
      %3070 = sbr.rel (0) target = $region33
    $region32: #{tpu_custom_call.1} parent=1 // pred_region
      %3072 = dma.done [#allocation4], 512
    $region33: #{tpu_custom_call.1} parent=1 // pred_fallthru
      _
    %3073 = vsyncpa [#allocation3], 1
    %3074 = vsyncpa [#allocation6], 1
    %3075 = vsyncpa [#allocation4], 1

</llo_original>
